<compile_context>
chip_gen: v5e
topology: v5e:2x2
jax: 0.10.0
libtpu: 0.0.40
codegen_flags: <defaults>
</compile_context>

<pallas_src>
import functools

import jax
import jax.numpy as jnp
from jax import lax
from jax.experimental import pallas as pl
from jax.experimental.pallas import tpu as pltpu

BN_EPS = 1e-5
LANE = 128
TILE_M = 1024            # target rows per grid step (big tiles ~ HBM roofline)
TILE_K = 512             # contraction tile (bounds VMEM for large Cin*KH*KW)
VMEM_BUDGET = 40 << 20   # per-step working-set budget (headroom on v7x 64 MiB)
VMEM_LIMIT = 48 << 20


def _round_up(x, m):
    return (x + m - 1) // m * m


def _ceil_div(a, b):
    return -(-a // b)


# ----------------------------------------------------------------------------
# Pass 1: K-tiled bf16 GEMM (f32 VMEM accumulator) + per-M-tile batch stats.
# ----------------------------------------------------------------------------
def _gemm_stats_kernel(x_ref, w_ref, y_ref, sum_ref, ssq_ref, acc_ref):
    k = pl.program_id(1)

    @pl.when(k == 0)
    def _():
        acc_ref[...] = jnp.zeros_like(acc_ref)

    acc_ref[...] += jnp.dot(x_ref[...], w_ref[...],
                            preferred_element_type=jnp.float32)

    @pl.when(k == pl.num_programs(1) - 1)
    def _():
        y = acc_ref[...]
        y_ref[...] = y.astype(y_ref.dtype)              # bf16 intermediate
        s = jnp.sum(y, axis=0, keepdims=True)            # (1, cp) f32
        sq = jnp.sum(y * y, axis=0, keepdims=True)
        # Per-tile partials live in an 8-sublane block (tile-aligned); row 0
        # carries the values, rows 1..7 are zeros and vanish in the finalize.
        row0 = lax.broadcasted_iota(jnp.int32, sum_ref.shape, 0) == 0
        sum_ref[...] = jnp.where(row0, s, 0.0)
        ssq_ref[...] = jnp.where(row0, sq, 0.0)


# ----------------------------------------------------------------------------
# Pass 2: fused BN scale/shift + ReLU, transposed (Cout-major) store.
# ----------------------------------------------------------------------------
def _bn_relu_t_kernel(y_ref, scale_ref, shift_ref, o_ref):
    z = y_ref[...].astype(jnp.float32) * scale_ref[...] + shift_ref[...]
    z = jnp.maximum(z, 0.0)
    o_ref[...] = z.T.astype(o_ref.dtype)   # XLU transpose overlaps the store


@functools.partial(jax.jit, static_argnames=("stride", "padding", "dilation"))
def conv_bn_relu(x, weight, bias, gamma, beta, *, stride=1, padding=0,
                 dilation=1):
    """x: (N, Cin, H, W) NCHW; weight: (Cout, Cin, KH, KW); returns NCHW f32."""
    del bias  # conv bias cancels exactly under training-mode BatchNorm
    n, cin, h, w = x.shape
    cout, _, kh, kw = weight.shape

    # im2col slab built in bf16 by XLA; feature order is (Cin, KH, KW), which
    # matches weight.reshape(cout, cin*kh*kw).
    patches = lax.conv_general_dilated_patches(
        x.astype(jnp.bfloat16), filter_shape=(kh, kw),
        window_strides=(stride, stride),
        padding=[(padding, padding), (padding, padding)],
        rhs_dilation=(dilation, dilation),
        dimension_numbers=("NCHW", "OIHW", "NHWC"))
    _, oh, ow, k = patches.shape
    m = n * oh * ow
    xcol = patches.reshape(m, k)

    # Lane-dense channel padding; 256-aligned for large Cout (v6e/v7x MXU).
    cp = _round_up(cout, 2 * LANE) if cout > LANE else LANE

    # K tiling: multiple of 128, capped at TILE_K; pad K up to a tile multiple.
    tile_k = min(TILE_K, _round_up(k, LANE))
    kp = _round_up(k, tile_k)
    kt = kp // tile_k

    # M tiling: multiple of 128 (lane-dense transposed store + clean XLU
    # transpose), sized against the VMEM budget, then evened across tiles.
    def step_vmem(tm):
        return (2 * tm * tile_k * 2      # x blocks (bf16, double buffered)
                + 2 * tile_k * cp * 2    # w blocks (bf16, double buffered)
                + 2 * tm * cp * 2        # y output blocks (bf16)
                + tm * cp * 4            # f32 accumulator scratch
                + 4 * 8 * cp * 4)        # stat partial blocks

    tile_m = TILE_M
    while tile_m > LANE and step_vmem(tile_m) > VMEM_BUDGET:
        tile_m //= 2
    tile_m = min(tile_m, _round_up(m, LANE))
    n_tiles = _ceil_div(m, tile_m)
    tile_m = _round_up(_ceil_div(m, n_tiles), LANE)
    mp = n_tiles * tile_m

    # Zero-padded bf16 operands (padded rows/cols are exact no-ops).
    xcol_p = jnp.pad(xcol, ((0, mp - m), (0, kp - k)))
    w_mat = jnp.pad(weight.reshape(cout, k).T.astype(jnp.bfloat16),
                    ((0, kp - k), (0, cp - cout)))
    g_row = jnp.pad(gamma.astype(jnp.float32).reshape(1, cout),
                    ((0, 0), (0, cp - cout)))
    b_row = jnp.pad(beta.astype(jnp.float32).reshape(1, cout),
                    ((0, 0), (0, cp - cout)))

    # ---- Pass 1: K-tiled GEMM + per-M-tile batch-stat partials -------------
    y, psum, pssq = pl.pallas_call(
        _gemm_stats_kernel,
        out_shape=(jax.ShapeDtypeStruct((mp, cp), jnp.bfloat16),
                   jax.ShapeDtypeStruct((8 * n_tiles, cp), jnp.float32),
                   jax.ShapeDtypeStruct((8 * n_tiles, cp), jnp.float32)),
        grid=(n_tiles, kt),
        in_specs=[
            pl.BlockSpec((tile_m, tile_k), lambda i, j: (i, j)),
            pl.BlockSpec((tile_k, cp), lambda i, j: (j, 0)),
        ],
        out_specs=(
            pl.BlockSpec((tile_m, cp), lambda i, j: (i, 0)),
            pl.BlockSpec((8, cp), lambda i, j: (i, 0)),
            pl.BlockSpec((8, cp), lambda i, j: (i, 0)),
        ),
        scratch_shapes=[pltpu.VMEM((tile_m, cp), jnp.float32)],
        compiler_params=pltpu.CompilerParams(
            dimension_semantics=("parallel", "arbitrary"),
            vmem_limit_bytes=VMEM_LIMIT),
    )(xcol_p, w_mat)

    # ---- Finalize BN stats -> one fused scale/shift (tiny (1, cp) math) ----
    inv_m = 1.0 / float(m)                    # padded rows contribute exactly 0
    mean = jnp.sum(psum, axis=0, keepdims=True) * inv_m
    var = jnp.sum(pssq, axis=0, keepdims=True) * inv_m - mean * mean
    var = jnp.maximum(var, 0.0)               # one-pass formula can go negative
    scale = g_row * lax.rsqrt(var + BN_EPS)
    shift = b_row - mean * scale

    # ---- Pass 2: scale/shift + ReLU, transposed (Cout, M) output -----------
    out_t = pl.pallas_call(
        _bn_relu_t_kernel,
        out_shape=jax.ShapeDtypeStruct((cp, mp), jnp.float32),
        grid=(n_tiles,),
        in_specs=[
            pl.BlockSpec((tile_m, cp), lambda i: (i, 0)),
            pl.BlockSpec((1, cp), lambda i: (0, 0)),
            pl.BlockSpec((1, cp), lambda i: (0, 0)),
        ],
        out_specs=pl.BlockSpec((cp, tile_m), lambda i: (0, i)),
        compiler_params=pltpu.CompilerParams(
            dimension_semantics=("parallel",),
            vmem_limit_bytes=VMEM_LIMIT),
    )(y, scale, shift)

    # (Cout, N*OH*OW) -> (N, Cout, OH, OW): contiguous leading-axis swap only.
    out = out_t[:cout, :m].reshape(cout, n, oh, ow)
    return out.transpose(1, 0, 2, 3)


# ----------------------------------------------------------------------------
# Pure-JAX f32 reference (module semantics) for correctness checks
# ----------------------------------------------------------------------------
def _reference(x, weight, bias, gamma, beta, stride, padding, dilation):
    y = lax.conv_general_dilated(
        x, weight, window_strides=(stride, stride),
        padding=[(padding, padding), (padding, padding)],
        rhs_dilation=(dilation, dilation),
        dimension_numbers=("NCHW", "OIHW", "NCHW"))
    y = y + bias.reshape(1, -1, 1, 1)
    mean = jnp.mean(y, axis=(0, 2, 3), keepdims=True)
    var = jnp.mean((y - mean) ** 2, axis=(0, 2, 3), keepdims=True)
    y = (y - mean) * lax.rsqrt(var + BN_EPS)
    y = gamma.reshape(1, -1, 1, 1) * y + beta.reshape(1, -1, 1, 1)
    return jnp.maximum(y, 0.0)


def _run_case(key, n, cin, h, w, cout, ksz, stride, padding, dilation,
              random_bn):
    kx, kw_, kb, kg, kbe = jax.random.split(key, 5)
    x = jax.random.normal(kx, (n, cin, h, w), dtype=jnp.float32)
    fan_in = cin * ksz * ksz
    bound = 1.0 / (fan_in ** 0.5)
    weight = jax.random.uniform(kw_, (cout, cin, ksz, ksz), jnp.float32,
                                -bound, bound)
    bias = jax.random.uniform(kb, (cout,), jnp.float32, -bound, bound)
    if random_bn:
        gamma = jax.random.uniform(kg, (cout,), jnp.float32, 0.5, 1.5)
        beta = jax.random.normal(kbe, (cout,), jnp.float32) * 0.1
    else:
        gamma = jnp.ones((cout,), jnp.float32)   # BatchNorm2d default weight
        beta = jnp.zeros((cout,), jnp.float32)   # BatchNorm2d default bias

    out = conv_bn_relu(x, weight, bias, gamma, beta,
                       stride=stride, padding=padding, dilation=dilation)
    out = jax.block_until_ready(out)

    ref = _reference(x, weight, bias, gamma, beta, stride, padding, dilation)
    assert out.shape == ref.shape, (out.shape, ref.shape)
    # bf16 GEMM inputs + bf16 intermediate (f32 accumulation / stats) =>
    # compare at bf16-level tolerance.
    assert jnp.allclose(out, ref, rtol=3e-2, atol=3e-2), (
        "mismatch vs reference; max abs diff = %f"
        % float(jnp.max(jnp.abs(out - ref))))


if __name__ == "__main__":
    key = jax.random.PRNGKey(0)
    k1, k2 = jax.random.split(key)

    # Module config from the spec: ConvBnRelu(4, 8, 3, stride=1, padding=1).
    _run_case(k1, n=2, cin=4, h=16, w=16, cout=8, ksz=3,
              stride=1, padding=1, dilation=1, random_bn=False)

    # Second shape: multi-tile grid (M=1058 -> 2 tiles of 640), dilation=2,
    # non-default BN affine params.
    _run_case(k2, n=2, cin=3, h=23, w=23, cout=6, ksz=3,
              stride=1, padding=2, dilation=2, random_bn=True)

    print("KERNEL_OK")
</pallas_src>

<mosaic_0001>
module attributes {stable_mosaic.version = 11 : i64} {
  func.func @_gemm_stats_kernel(%arg0: i32, %arg1: i32, %arg2: memref<512x128xbf16, #tpu.memory_space<vmem>>, %arg3: memref<128x128xbf16, #tpu.memory_space<vmem>>, %arg4: memref<512x128xbf16, #tpu.memory_space<vmem>>, %arg5: memref<8x128xf32, #tpu.memory_space<vmem>>, %arg6: memref<8x128xf32, #tpu.memory_space<vmem>>, %arg7: memref<512x128xf32, #tpu.memory_space<vmem>>) attributes {dimension_semantics = [#tpu.dimension_semantics<parallel>, #tpu.dimension_semantics<arbitrary>], iteration_bounds = array<i64: 1, 1>, scalar_prefetch = 0 : i64, scratch_operands = 1 : i64, tpu.core_type = #tpu.core_type<tc>, window_params = [{transform_indices = @transform_0, window_bounds = array<i64: 512, 128>}, {transform_indices = @transform_1, window_bounds = array<i64: 128, 128>}, {transform_indices = @transform_2, window_bounds = array<i64: 512, 128>}, {transform_indices = @transform_3, window_bounds = array<i64: 8, 128>}, {transform_indices = @transform_4, window_bounds = array<i64: 8, 128>}]} {
    %c0_i32 = arith.constant 0 : i32
    %0 = arith.cmpi eq, %arg1, %c0_i32 : i32
    %1 = arith.extui %0 : i1 to i32
    %c0_i32_0 = arith.constant 0 : i32
    %2 = arith.cmpi ne, %1, %c0_i32_0 : i32
    scf.if %2 {
      %cst_10 = arith.constant 0.000000e+00 : f32
      %12 = vector.broadcast %cst_10 : f32 to vector<512x128xf32>
      %c0_11 = arith.constant 0 : index
      %c0_12 = arith.constant 0 : index
      %13 = vector.load %arg7[%c0_11, %c0_12] : memref<512x128xf32, #tpu.memory_space<vmem>>, vector<512x128xf32>
      tpu.vector_store %arg7[%c0_11, %c0_12], %12 {strides = array<i32>} : memref<512x128xf32, #tpu.memory_space<vmem>>, vector<512x128xf32>,
    } else {
    }
    %c0 = arith.constant 0 : index
    %c0_1 = arith.constant 0 : index
    %3 = vector.load %arg7[%c0, %c0_1] : memref<512x128xf32, #tpu.memory_space<vmem>>, vector<512x128xf32>
    %c0_2 = arith.constant 0 : index
    %c0_3 = arith.constant 0 : index
    %4 = vector.load %arg2[%c0_2, %c0_3] : memref<512x128xbf16, #tpu.memory_space<vmem>>, vector<512x128xbf16>
    %c0_4 = arith.constant 0 : index
    %c0_5 = arith.constant 0 : index
    %5 = vector.load %arg3[%c0_4, %c0_5] : memref<128x128xbf16, #tpu.memory_space<vmem>>, vector<128x128xbf16>
    %cst = arith.constant dense<0.000000e+00> : vector<512x128xf32>
    %6 = tpu.matmul %4, %5, %cst {dimension_numbers = #tpu.dot_dimension_numbers<[1], [0], [0], [1], [0, 0, 1, 1], [], []>} : vector<512x128xbf16>, vector<128x128xbf16>, vector<512x128xf32> -> vector<512x128xf32>
    %7 = arith.addf %3, %6 : vector<512x128xf32>
    %c0_6 = arith.constant 0 : index
    %c0_7 = arith.constant 0 : index
    %8 = vector.load %arg7[%c0_6, %c0_7] : memref<512x128xf32, #tpu.memory_space<vmem>>, vector<512x128xf32>
    tpu.vector_store %arg7[%c0_6, %c0_7], %7 {strides = array<i32>} : memref<512x128xf32, #tpu.memory_space<vmem>>, vector<512x128xf32>,
    %c0_i32_8 = arith.constant 0 : i32
    %9 = arith.cmpi eq, %arg1, %c0_i32_8 : i32
    %10 = arith.extui %9 : i1 to i32
    %c0_i32_9 = arith.constant 0 : i32
    %11 = arith.cmpi ne, %10, %c0_i32_9 : i32
    scf.if %11 {
      %c0_10 = arith.constant 0 : index
      %c0_11 = arith.constant 0 : index
      %12 = vector.load %arg7[%c0_10, %c0_11] : memref<512x128xf32, #tpu.memory_space<vmem>>, vector<512x128xf32>
      %13 = arith.truncf %12 : vector<512x128xf32> to vector<512x128xbf16>
      %c0_12 = arith.constant 0 : index
      %c0_13 = arith.constant 0 : index
      %14 = vector.load %arg4[%c0_12, %c0_13] : memref<512x128xbf16, #tpu.memory_space<vmem>>, vector<512x128xbf16>
      tpu.vector_store %arg4[%c0_12, %c0_13], %13 {strides = array<i32>} : memref<512x128xbf16, #tpu.memory_space<vmem>>, vector<512x128xbf16>,
      %cst_14 = arith.constant dense<0.000000e+00> : vector<128xf32>
      %15 = vector.multi_reduction <add>, %12, %cst_14 [0] : vector<512x128xf32> to vector<128xf32>
      %16 = vector.shape_cast %15 : vector<128xf32> to vector<1x128xf32>
      %17 = arith.mulf %12, %12 : vector<512x128xf32>
      %cst_15 = arith.constant dense<0.000000e+00> : vector<128xf32>
      %18 = vector.multi_reduction <add>, %17, %cst_15 [0] : vector<512x128xf32> to vector<128xf32>
      %19 = vector.shape_cast %18 : vector<128xf32> to vector<1x128xf32>
      %20 = tpu.iota {dimensions = array<i32: 0>} : vector<8x128xi32>
      %c0_i32_16 = arith.constant 0 : i32
      %21 = vector.broadcast %c0_i32_16 : i32 to vector<8x128xi32>
      %22 = arith.cmpi eq, %20, %21 : vector<8x128xi32>
      %cst_17 = arith.constant 0.000000e+00 : f32
      %23 = vector.shape_cast %16 : vector<1x128xf32> to vector<1x128xf32>
      %24 = vector.broadcast %23 : vector<1x128xf32> to vector<8x128xf32>
      %25 = vector.broadcast %cst_17 : f32 to vector<8x128xf32>
      %26 = arith.select %22, %24, %25 : vector<8x128xi1>, vector<8x128xf32>
      %c0_18 = arith.constant 0 : index
      %c0_19 = arith.constant 0 : index
      %27 = vector.load %arg5[%c0_18, %c0_19] : memref<8x128xf32, #tpu.memory_space<vmem>>, vector<8x128xf32>
      tpu.vector_store %arg5[%c0_18, %c0_19], %26 {strides = array<i32>} : memref<8x128xf32, #tpu.memory_space<vmem>>, vector<8x128xf32>,
      %cst_20 = arith.constant 0.000000e+00 : f32
      %28 = vector.shape_cast %19 : vector<1x128xf32> to vector<1x128xf32>
      %29 = vector.broadcast %28 : vector<1x128xf32> to vector<8x128xf32>
      %30 = vector.broadcast %cst_20 : f32 to vector<8x128xf32>
      %31 = arith.select %22, %29, %30 : vector<8x128xi1>, vector<8x128xf32>
      %c0_21 = arith.constant 0 : index
      %c0_22 = arith.constant 0 : index
      %32 = vector.load %arg6[%c0_21, %c0_22] : memref<8x128xf32, #tpu.memory_space<vmem>>, vector<8x128xf32>
      tpu.vector_store %arg6[%c0_21, %c0_22], %31 {strides = array<i32>} : memref<8x128xf32, #tpu.memory_space<vmem>>, vector<8x128xf32>,
    } else {
    }
    return
  }
  func.func @transform_0(%arg0: i32, %arg1: i32) -> (i32, i32) {
    %c0_i32 = arith.constant 0 : i32
    return %arg0, %arg1 : i32, i32
  }
  func.func @transform_1(%arg0: i32, %arg1: i32) -> (i32, i32) {
    %c0_i32 = arith.constant 0 : i32
    %c0_i32_0 = arith.constant 0 : i32
    return %arg1, %c0_i32 : i32, i32
  }
  func.func @transform_2(%arg0: i32, %arg1: i32) -> (i32, i32) {
    %c0_i32 = arith.constant 0 : i32
    %c0_i32_0 = arith.constant 0 : i32
    return %arg0, %c0_i32 : i32, i32
  }
  func.func @transform_3(%arg0: i32, %arg1: i32) -> (i32, i32) {
    %c0_i32 = arith.constant 0 : i32
    %c0_i32_0 = arith.constant 0 : i32
    return %arg0, %c0_i32 : i32, i32
  }
  func.func @transform_4(%arg0: i32, %arg1: i32) -> (i32, i32) {
    %c0_i32 = arith.constant 0 : i32
    %c0_i32_0 = arith.constant 0 : i32
    return %arg0, %c0_i32 : i32, i32
  }
}

module attributes {stable_mosaic.version = 11 : i64} {
  func.func @_bn_relu_t_kernel(%arg0: i32, %arg1: memref<512x128xbf16, #tpu.memory_space<vmem>>, %arg2: memref<1x128xf32, #tpu.memory_space<vmem>>, %arg3: memref<1x128xf32, #tpu.memory_space<vmem>>, %arg4: memref<128x512xf32, #tpu.memory_space<vmem>>) attributes {dimension_semantics = [#tpu.dimension_semantics<parallel>], iteration_bounds = array<i64: 1>, scalar_prefetch = 0 : i64, scratch_operands = 0 : i64, tpu.core_type = #tpu.core_type<tc>, window_params = [{transform_indices = @transform_0, window_bounds = array<i64: 512, 128>}, {pipeline_mode = #tpu.pipeline_mode<synchronous>, transform_indices = @transform_1, window_bounds = array<i64: 1, 128>}, {pipeline_mode = #tpu.pipeline_mode<synchronous>, transform_indices = @transform_2, window_bounds = array<i64: 1, 128>}, {transform_indices = @transform_3, window_bounds = array<i64: 128, 512>}]} {
    %c0 = arith.constant 0 : index
    %c0_0 = arith.constant 0 : index
    %0 = vector.load %arg1[%c0, %c0_0] : memref<512x128xbf16, #tpu.memory_space<vmem>>, vector<512x128xbf16>
    %1 = arith.extf %0 : vector<512x128xbf16> to vector<512x128xf32>
    %c0_1 = arith.constant 0 : index
    %c0_2 = arith.constant 0 : index
    %2 = vector.load %arg2[%c0_1, %c0_2] : memref<1x128xf32, #tpu.memory_space<vmem>>, vector<1x128xf32>
    %3 = vector.broadcast %2 : vector<1x128xf32> to vector<512x128xf32>
    %4 = arith.mulf %1, %3 : vector<512x128xf32>
    %c0_3 = arith.constant 0 : index
    %c0_4 = arith.constant 0 : index
    %5 = vector.load %arg3[%c0_3, %c0_4] : memref<1x128xf32, #tpu.memory_space<vmem>>, vector<1x128xf32>
    %6 = vector.broadcast %5 : vector<1x128xf32> to vector<512x128xf32>
    %7 = arith.addf %4, %6 : vector<512x128xf32>
    %cst = arith.constant 0.000000e+00 : f32
    %8 = vector.broadcast %cst : f32 to vector<512x128xf32>
    %9 = arith.maximumf %7, %8 : vector<512x128xf32>
    %10 = tpu.transpose %9, [1, 0] : vector<512x128xf32> -> vector<128x512xf32>
    %c0_5 = arith.constant 0 : index
    %c0_6 = arith.constant 0 : index
    %11 = vector.load %arg4[%c0_5, %c0_6] : memref<128x512xf32, #tpu.memory_space<vmem>>, vector<128x512xf32>
    tpu.vector_store %arg4[%c0_5, %c0_6], %10 {strides = array<i32>} : memref<128x512xf32, #tpu.memory_space<vmem>>, vector<128x512xf32>,
    return
  }
  func.func @transform_0(%arg0: i32) -> (i32, i32) {
    %c0_i32 = arith.constant 0 : i32
    %c0_i32_0 = arith.constant 0 : i32
    return %arg0, %c0_i32 : i32, i32
  }
  func.func @transform_1(%arg0: i32) -> (i32, i32) {
    %c0_i32 = arith.constant 0 : i32
    %c0_i32_0 = arith.constant 0 : i32
    %c0_i32_1 = arith.constant 0 : i32
    return %c0_i32, %c0_i32_0 : i32, i32
  }
  func.func @transform_2(%arg0: i32) -> (i32, i32) {
    %c0_i32 = arith.constant 0 : i32
    %c0_i32_0 = arith.constant 0 : i32
    %c0_i32_1 = arith.constant 0 : i32
    return %c0_i32, %c0_i32_0 : i32, i32
  }
  func.func @transform_3(%arg0: i32) -> (i32, i32) {
    %c0_i32 = arith.constant 0 : i32
    %c0_i32_0 = arith.constant 0 : i32
    return %c0_i32, %arg0 : i32, i32
  }
}

</mosaic_0001>

<llo_original>
// kernel: conv_bn_relu.3
$region0: #{conv_bn_relu.3}
  #allocation0 [shape = 'u32[]', space=smem, size = 0x4, offset = 0x4, fixed_abs, tag = 'smem constant byte address 0x4 - core index']
  #allocation1 [shape = 'u32[72,128]{1,0:T(1,128)}', space=vmem, size = 0x9000, scoped, tag = 'internal scratch']
  %s0 = inlined_call_operand.vmem [shape: bf16[512,128], index: 0, kind: input, shape index: {}]
  %s1 = inlined_call_operand.vmem [shape: f32[1,128], index: 1, kind: input, shape index: {}]
  %s2 = inlined_call_operand.vmem [shape: f32[1,128], index: 2, kind: input, shape index: {}]
  %s3 = inlined_call_operand.vmem [shape: f32[128,512], index: 3, kind: output, shape index: {}]
  %s4 = sld [smem:[#allocation0]]
  $region22: #{conv_bn_relu.3} parent=0
    _
  %s6 = ssub.s32 1, %s4
  %s7 = scalar_select 0, %s6, %s4
  // Predicated region
  $region2: #{conv_bn_relu.3} parent=0 // pred_check
    _
  $region3: #{conv_bn_relu.3} parent=0 // pred_check_branch
    %9 = sbr.rel (0) target = $region5
  $region4: #{conv_bn_relu.3} parent=0 // pred_region
    _
  $region5: #{conv_bn_relu.3} parent=0 // pred_fallthru
    _
  // Predicated region
  $region6: #{conv_bn_relu.3} parent=0 // pred_check
    _
  $region7: #{conv_bn_relu.3} parent=0 // pred_check_branch
    %11 = sbr.rel (0) target = $region9
  $region8: #{conv_bn_relu.3} parent=0 // pred_region
    _
  $region9: #{conv_bn_relu.3} parent=0 // pred_fallthru
    _
  // Predicated region
  $region10: #{conv_bn_relu.3} parent=0 // pred_check
    _
  $region11: #{conv_bn_relu.3} parent=0 // pred_check_branch
    %13 = sbr.rel (0) target = $region13
  $region12: #{conv_bn_relu.3} parent=0 // pred_region
    _
  $region13: #{conv_bn_relu.3} parent=0 // pred_fallthru
    _
  %v14 = vld [vmem:[%s0] sm:$0xf]
  %v15 = vld [vmem:[%s0 + $0x4] sm:$0xf]
  %v16 = vld [vmem:[%s0 + $0x8] sm:$0xf]
  %v17 = vld [vmem:[%s0 + $0xc] sm:$0xf]
  %v18 = vld [vmem:[%s0 + $0x10] sm:$0xf]
  %v19 = vld [vmem:[%s0 + $0x14] sm:$0xf]
  %v20 = vld [vmem:[%s0 + $0x18] sm:$0xf]
  %v21 = vld [vmem:[%s0 + $0x1c] sm:$0xf]
  %v22 = vld [vmem:[%s0 + $0x20] sm:$0xf]
  %v23 = vld [vmem:[%s0 + $0x24] sm:$0xf]
  %v24 = vld [vmem:[%s0 + $0x28] sm:$0xf]
  %v25 = vld [vmem:[%s0 + $0x2c] sm:$0xf]
  %v26 = vld [vmem:[%s0 + $0x30] sm:$0xf]
  %v27 = vld [vmem:[%s0 + $0x34] sm:$0xf]
  %v28 = vld [vmem:[%s0 + $0x38] sm:$0xf]
  %v29 = vld [vmem:[%s0 + $0x3c] sm:$0xf]
  %v30 = vld [vmem:[%s0 + $0x40] sm:$0xf]
  %v31 = vld [vmem:[%s0 + $0x44] sm:$0xf]
  %v32 = vld [vmem:[%s0 + $0x48] sm:$0xf]
  %v33 = vld [vmem:[%s0 + $0x4c] sm:$0xf]
  %v34 = vld [vmem:[%s0 + $0x50] sm:$0xf]
  %v35 = vld [vmem:[%s0 + $0x54] sm:$0xf]
  %v36 = vld [vmem:[%s0 + $0x58] sm:$0xf]
  %v37 = vld [vmem:[%s0 + $0x5c] sm:$0xf]
  %v38 = vld [vmem:[%s0 + $0x60] sm:$0xf]
  %v39 = vld [vmem:[%s0 + $0x64] sm:$0xf]
  %v40 = vld [vmem:[%s0 + $0x68] sm:$0xf]
  %v41 = vld [vmem:[%s0 + $0x6c] sm:$0xf]
  %v42 = vld [vmem:[%s0 + $0x70] sm:$0xf]
  %v43 = vld [vmem:[%s0 + $0x74] sm:$0xf]
  %v44 = vld [vmem:[%s0 + $0x78] sm:$0xf]
  %v45 = vld [vmem:[%s0 + $0x7c] sm:$0xf]
  %v46 = vld [vmem:[%s0 + $0x80] sm:$0xf]
  %v47 = vld [vmem:[%s0 + $0x84] sm:$0xf]
  %v48 = vld [vmem:[%s0 + $0x88] sm:$0xf]
  %v49 = vld [vmem:[%s0 + $0x8c] sm:$0xf]
  %v50 = vld [vmem:[%s0 + $0x90] sm:$0xf]
  %v51 = vld [vmem:[%s0 + $0x94] sm:$0xf]
  %v52 = vld [vmem:[%s0 + $0x98] sm:$0xf]
  %v53 = vld [vmem:[%s0 + $0x9c] sm:$0xf]
  %v54 = vld [vmem:[%s0 + $0xa0] sm:$0xf]
  %v55 = vld [vmem:[%s0 + $0xa4] sm:$0xf]
  %v56 = vld [vmem:[%s0 + $0xa8] sm:$0xf]
  %v57 = vld [vmem:[%s0 + $0xac] sm:$0xf]
  %v58 = vld [vmem:[%s0 + $0xb0] sm:$0xf]
  %v59 = vld [vmem:[%s0 + $0xb4] sm:$0xf]
  %v60 = vld [vmem:[%s0 + $0xb8] sm:$0xf]
  %v61 = vld [vmem:[%s0 + $0xbc] sm:$0xf]
  %v62 = vld [vmem:[%s0 + $0xc0] sm:$0xf]
  %v63 = vld [vmem:[%s0 + $0xc4] sm:$0xf]
  %v64 = vld [vmem:[%s0 + $0xc8] sm:$0xf]
  %v65 = vld [vmem:[%s0 + $0xcc] sm:$0xf]
  %v66 = vld [vmem:[%s0 + $0xd0] sm:$0xf]
  %v67 = vld [vmem:[%s0 + $0xd4] sm:$0xf]
  %v68 = vld [vmem:[%s0 + $0xd8] sm:$0xf]
  %v69 = vld [vmem:[%s0 + $0xdc] sm:$0xf]
  %v70 = vld [vmem:[%s0 + $0xe0] sm:$0xf]
  %v71 = vld [vmem:[%s0 + $0xe4] sm:$0xf]
  %v72 = vld [vmem:[%s0 + $0xe8] sm:$0xf]
  %v73 = vld [vmem:[%s0 + $0xec] sm:$0xf]
  %v74 = vld [vmem:[%s0 + $0xf0] sm:$0xf]
  %v75 = vld [vmem:[%s0 + $0xf4] sm:$0xf]
  %v76 = vld [vmem:[%s0 + $0xf8] sm:$0xf]
  %v77 = vld [vmem:[%s0 + $0xfc] sm:$0xf]
  %v78 = vunpack.c.l.bf16 %v14
  %v79 = vunpack.c.l.bf16 %v15
  %v80 = vunpack.c.l.bf16 %v16
  %v81 = vunpack.c.l.bf16 %v17
  %v82 = vunpack.c.l.bf16 %v18
  %v83 = vunpack.c.l.bf16 %v19
  %v84 = vunpack.c.l.bf16 %v20
  %v85 = vunpack.c.l.bf16 %v21
  %v86 = vunpack.c.l.bf16 %v22
  %v87 = vunpack.c.l.bf16 %v23
  %v88 = vunpack.c.l.bf16 %v24
  %v89 = vunpack.c.l.bf16 %v25
  %v90 = vunpack.c.l.bf16 %v26
  %v91 = vunpack.c.l.bf16 %v27
  %v92 = vunpack.c.l.bf16 %v28
  %v93 = vunpack.c.l.bf16 %v29
  %v94 = vunpack.c.l.bf16 %v30
  %v95 = vunpack.c.l.bf16 %v31
  %v96 = vunpack.c.l.bf16 %v32
  %v97 = vunpack.c.l.bf16 %v33
  %v98 = vunpack.c.l.bf16 %v34
  %v99 = vunpack.c.l.bf16 %v35
  %v100 = vunpack.c.l.bf16 %v36
  %v101 = vunpack.c.l.bf16 %v37
  %v102 = vunpack.c.l.bf16 %v38
  %v103 = vunpack.c.l.bf16 %v39
  %v104 = vunpack.c.l.bf16 %v40
  %v105 = vunpack.c.l.bf16 %v41
  %v106 = vunpack.c.l.bf16 %v42
  %v107 = vunpack.c.l.bf16 %v43
  %v108 = vunpack.c.l.bf16 %v44
  %v109 = vunpack.c.l.bf16 %v45
  %v110 = vunpack.c.l.bf16 %v46
  %v111 = vunpack.c.l.bf16 %v47
  %v112 = vunpack.c.l.bf16 %v48
  %v113 = vunpack.c.l.bf16 %v49
  %v114 = vunpack.c.l.bf16 %v50
  %v115 = vunpack.c.l.bf16 %v51
  %v116 = vunpack.c.l.bf16 %v52
  %v117 = vunpack.c.l.bf16 %v53
  %v118 = vunpack.c.l.bf16 %v54
  %v119 = vunpack.c.l.bf16 %v55
  %v120 = vunpack.c.l.bf16 %v56
  %v121 = vunpack.c.l.bf16 %v57
  %v122 = vunpack.c.l.bf16 %v58
  %v123 = vunpack.c.l.bf16 %v59
  %v124 = vunpack.c.l.bf16 %v60
  %v125 = vunpack.c.l.bf16 %v61
  %v126 = vunpack.c.l.bf16 %v62
  %v127 = vunpack.c.l.bf16 %v63
  %v128 = vunpack.c.l.bf16 %v64
  %v129 = vunpack.c.l.bf16 %v65
  %v130 = vunpack.c.l.bf16 %v66
  %v131 = vunpack.c.l.bf16 %v67
  %v132 = vunpack.c.l.bf16 %v68
  %v133 = vunpack.c.l.bf16 %v69
  %v134 = vunpack.c.l.bf16 %v70
  %v135 = vunpack.c.l.bf16 %v71
  %v136 = vunpack.c.l.bf16 %v72
  %v137 = vunpack.c.l.bf16 %v73
  %v138 = vunpack.c.l.bf16 %v74
  %v139 = vunpack.c.l.bf16 %v75
  %v140 = vunpack.c.l.bf16 %v76
  %v141 = vunpack.c.l.bf16 %v77
  %v142 = vld [vmem:[%s1] sm:$0x1]
  %v144 = vperm.slane %v142, 0
  %v146 = vmul.f32 %v78, %v144
  %v147 = vmul.f32 %v79, %v144
  %v148 = vmul.f32 %v80, %v144
  %v149 = vmul.f32 %v81, %v144
  %v150 = vmul.f32 %v82, %v144
  %v151 = vmul.f32 %v83, %v144
  %v152 = vmul.f32 %v84, %v144
  %v153 = vmul.f32 %v85, %v144
  %v154 = vmul.f32 %v86, %v144
  %v155 = vmul.f32 %v87, %v144
  %v156 = vmul.f32 %v88, %v144
  %v157 = vmul.f32 %v89, %v144
  %v158 = vmul.f32 %v90, %v144
  %v159 = vmul.f32 %v91, %v144
  %v160 = vmul.f32 %v92, %v144
  %v161 = vmul.f32 %v93, %v144
  %v162 = vmul.f32 %v94, %v144
  %v163 = vmul.f32 %v95, %v144
  %v164 = vmul.f32 %v96, %v144
  %v165 = vmul.f32 %v97, %v144
  %v166 = vmul.f32 %v98, %v144
  %v167 = vmul.f32 %v99, %v144
  %v168 = vmul.f32 %v100, %v144
  %v169 = vmul.f32 %v101, %v144
  %v170 = vmul.f32 %v102, %v144
  %v171 = vmul.f32 %v103, %v144
  %v172 = vmul.f32 %v104, %v144
  %v173 = vmul.f32 %v105, %v144
  %v174 = vmul.f32 %v106, %v144
  %v175 = vmul.f32 %v107, %v144
  %v176 = vmul.f32 %v108, %v144
  %v177 = vmul.f32 %v109, %v144
  %v178 = vmul.f32 %v110, %v144
  %v179 = vmul.f32 %v111, %v144
  %v180 = vmul.f32 %v112, %v144
  %v181 = vmul.f32 %v113, %v144
  %v182 = vmul.f32 %v114, %v144
  %v183 = vmul.f32 %v115, %v144
  %v184 = vmul.f32 %v116, %v144
  %v185 = vmul.f32 %v117, %v144
  %v186 = vmul.f32 %v118, %v144
  %v187 = vmul.f32 %v119, %v144
  %v188 = vmul.f32 %v120, %v144
  %v189 = vmul.f32 %v121, %v144
  %v190 = vmul.f32 %v122, %v144
  %v191 = vmul.f32 %v123, %v144
  %v192 = vmul.f32 %v124, %v144
  %v193 = vmul.f32 %v125, %v144
  %v194 = vmul.f32 %v126, %v144
  %v195 = vmul.f32 %v127, %v144
  %v196 = vmul.f32 %v128, %v144
  %v197 = vmul.f32 %v129, %v144
  %v198 = vmul.f32 %v130, %v144
  %v199 = vmul.f32 %v131, %v144
  %v200 = vmul.f32 %v132, %v144
  %v201 = vmul.f32 %v133, %v144
  %v202 = vmul.f32 %v134, %v144
  %v203 = vmul.f32 %v135, %v144
  %v204 = vmul.f32 %v136, %v144
  %v205 = vmul.f32 %v137, %v144
  %v206 = vmul.f32 %v138, %v144
  %v207 = vmul.f32 %v139, %v144
  %v208 = vmul.f32 %v140, %v144
  %v209 = vmul.f32 %v141, %v144
  %v210 = vld [vmem:[%s2] sm:$0x1]
  %v212 = vperm.slane %v210, 0
  %v214 = vadd.f32 %v146, %v212
  %v215 = vadd.f32 %v147, %v212
  %v216 = vadd.f32 %v148, %v212
  %v217 = vadd.f32 %v149, %v212
  %v218 = vadd.f32 %v150, %v212
  %v219 = vadd.f32 %v151, %v212
  %v220 = vadd.f32 %v152, %v212
  %v221 = vadd.f32 %v153, %v212
  %v222 = vadd.f32 %v154, %v212
  %v223 = vadd.f32 %v155, %v212
  %v224 = vadd.f32 %v156, %v212
  %v225 = vadd.f32 %v157, %v212
  %v226 = vadd.f32 %v158, %v212
  %v227 = vadd.f32 %v159, %v212
  %v228 = vadd.f32 %v160, %v212
  %v229 = vadd.f32 %v161, %v212
  %v230 = vadd.f32 %v162, %v212
  %v231 = vadd.f32 %v163, %v212
  %v232 = vadd.f32 %v164, %v212
  %v233 = vadd.f32 %v165, %v212
  %v234 = vadd.f32 %v166, %v212
  %v235 = vadd.f32 %v167, %v212
  %v236 = vadd.f32 %v168, %v212
  %v237 = vadd.f32 %v169, %v212
  %v238 = vadd.f32 %v170, %v212
  %v239 = vadd.f32 %v171, %v212
  %v240 = vadd.f32 %v172, %v212
  %v241 = vadd.f32 %v173, %v212
  %v242 = vadd.f32 %v174, %v212
  %v243 = vadd.f32 %v175, %v212
  %v244 = vadd.f32 %v176, %v212
  %v245 = vadd.f32 %v177, %v212
  %v246 = vadd.f32 %v178, %v212
  %v247 = vadd.f32 %v179, %v212
  %v248 = vadd.f32 %v180, %v212
  %v249 = vadd.f32 %v181, %v212
  %v250 = vadd.f32 %v182, %v212
  %v251 = vadd.f32 %v183, %v212
  %v252 = vadd.f32 %v184, %v212
  %v253 = vadd.f32 %v185, %v212
  %v254 = vadd.f32 %v186, %v212
  %v255 = vadd.f32 %v187, %v212
  %v256 = vadd.f32 %v188, %v212
  %v257 = vadd.f32 %v189, %v212
  %v258 = vadd.f32 %v190, %v212
  %v259 = vadd.f32 %v191, %v212
  %v260 = vadd.f32 %v192, %v212
  %v261 = vadd.f32 %v193, %v212
  %v262 = vadd.f32 %v194, %v212
  %v263 = vadd.f32 %v195, %v212
  %v264 = vadd.f32 %v196, %v212
  %v265 = vadd.f32 %v197, %v212
  %v266 = vadd.f32 %v198, %v212
  %v267 = vadd.f32 %v199, %v212
  %v268 = vadd.f32 %v200, %v212
  %v269 = vadd.f32 %v201, %v212
  %v270 = vadd.f32 %v202, %v212
  %v271 = vadd.f32 %v203, %v212
  %v272 = vadd.f32 %v204, %v212
  %v273 = vadd.f32 %v205, %v212
  %v274 = vadd.f32 %v206, %v212
  %v275 = vadd.f32 %v207, %v212
  %v276 = vadd.f32 %v208, %v212
  %v277 = vadd.f32 %v209, %v212
  %v278 = vmax.f32 %v214, 0.0
  %v279 = vmax.f32 %v215, 0.0
  %v280 = vmax.f32 %v216, 0.0
  %v281 = vmax.f32 %v217, 0.0
  %v282 = vmax.f32 %v218, 0.0
  %v283 = vmax.f32 %v219, 0.0
  %v284 = vmax.f32 %v220, 0.0
  %v285 = vmax.f32 %v221, 0.0
  %v286 = vmax.f32 %v222, 0.0
  %v287 = vmax.f32 %v223, 0.0
  %v288 = vmax.f32 %v224, 0.0
  %v289 = vmax.f32 %v225, 0.0
  %v290 = vmax.f32 %v226, 0.0
  %v291 = vmax.f32 %v227, 0.0
  %v292 = vmax.f32 %v228, 0.0
  %v293 = vmax.f32 %v229, 0.0
  %v294 = vmax.f32 %v230, 0.0
  %v295 = vmax.f32 %v231, 0.0
  %v296 = vmax.f32 %v232, 0.0
  %v297 = vmax.f32 %v233, 0.0
  %v298 = vmax.f32 %v234, 0.0
  %v299 = vmax.f32 %v235, 0.0
  %v300 = vmax.f32 %v236, 0.0
  %v301 = vmax.f32 %v237, 0.0
  %v302 = vmax.f32 %v238, 0.0
  %v303 = vmax.f32 %v239, 0.0
  %v304 = vmax.f32 %v240, 0.0
  %v305 = vmax.f32 %v241, 0.0
  %v306 = vmax.f32 %v242, 0.0
  %v307 = vmax.f32 %v243, 0.0
  %v308 = vmax.f32 %v244, 0.0
  %v309 = vmax.f32 %v245, 0.0
  %v310 = vmax.f32 %v246, 0.0
  %v311 = vmax.f32 %v247, 0.0
  %v312 = vmax.f32 %v248, 0.0
  %v313 = vmax.f32 %v249, 0.0
  %v314 = vmax.f32 %v250, 0.0
  %v315 = vmax.f32 %v251, 0.0
  %v316 = vmax.f32 %v252, 0.0
  %v317 = vmax.f32 %v253, 0.0
  %v318 = vmax.f32 %v254, 0.0
  %v319 = vmax.f32 %v255, 0.0
  %v320 = vmax.f32 %v256, 0.0
  %v321 = vmax.f32 %v257, 0.0
  %v322 = vmax.f32 %v258, 0.0
  %v323 = vmax.f32 %v259, 0.0
  %v324 = vmax.f32 %v260, 0.0
  %v325 = vmax.f32 %v261, 0.0
  %v326 = vmax.f32 %v262, 0.0
  %v327 = vmax.f32 %v263, 0.0
  %v328 = vmax.f32 %v264, 0.0
  %v329 = vmax.f32 %v265, 0.0
  %v330 = vmax.f32 %v266, 0.0
  %v331 = vmax.f32 %v267, 0.0
  %v332 = vmax.f32 %v268, 0.0
  %v333 = vmax.f32 %v269, 0.0
  %v334 = vmax.f32 %v270, 0.0
  %v335 = vmax.f32 %v271, 0.0
  %v336 = vmax.f32 %v272, 0.0
  %v337 = vmax.f32 %v273, 0.0
  %v338 = vmax.f32 %v274, 0.0
  %v339 = vmax.f32 %v275, 0.0
  %v340 = vmax.f32 %v276, 0.0
  %v341 = vmax.f32 %v277, 0.0
  %342 = vxpose.xlu0.b32.start [1/16] %v278, 128
  %343 = vxpose.xlu0.b32.cont [2/16] %v279, 128
  %344 = vxpose.xlu0.b32.cont [3/16] %v280, 128
  %345 = vxpose.xlu0.b32.cont [4/16] %v281, 128
  %346 = vxpose.xlu0.b32.cont [5/16] %v282, 128
  %347 = vxpose.xlu0.b32.cont [6/16] %v283, 128
  %348 = vxpose.xlu0.b32.cont [7/16] %v284, 128
  %349 = vxpose.xlu0.b32.cont [8/16] %v285, 128
  %350 = vxpose.xlu0.b32.cont [9/16] %v286, 128
  %351 = vxpose.xlu0.b32.cont [10/16] %v287, 128
  %352 = vxpose.xlu0.b32.cont [11/16] %v288, 128
  %353 = vxpose.xlu0.b32.cont [12/16] %v289, 128
  %354 = vxpose.xlu0.b32.cont [13/16] %v290, 128
  %355 = vxpose.xlu0.b32.cont [14/16] %v291, 128
  %356 = vxpose.xlu0.b32.cont [15/16] %v292, 128
  %357 = vxpose.xlu0.b32.end [16/16] %v293, 128
  %v358 = vpop.trf.xlu0
  %v359 = vpop.trf.xlu0
  %v360 = vpop.trf.xlu0
  %v361 = vpop.trf.xlu0
  %v362 = vpop.trf.xlu0
  %v363 = vpop.trf.xlu0
  %v364 = vpop.trf.xlu0
  %v365 = vpop.trf.xlu0
  %v366 = vpop.trf.xlu0
  %v367 = vpop.trf.xlu0
  %v368 = vpop.trf.xlu0
  %v369 = vpop.trf.xlu0
  %v370 = vpop.trf.xlu0
  %v371 = vpop.trf.xlu0
  %v372 = vpop.trf.xlu0
  %v373 = vpop.trf.xlu0
  %374 = vxpose.xlu0.b32.start [1/16] %v294, 128
  %375 = vxpose.xlu0.b32.cont [2/16] %v295, 128
  %376 = vxpose.xlu0.b32.cont [3/16] %v296, 128
  %377 = vxpose.xlu0.b32.cont [4/16] %v297, 128
  %378 = vxpose.xlu0.b32.cont [5/16] %v298, 128
  %379 = vxpose.xlu0.b32.cont [6/16] %v299, 128
  %380 = vxpose.xlu0.b32.cont [7/16] %v300, 128
  %381 = vxpose.xlu0.b32.cont [8/16] %v301, 128
  %382 = vxpose.xlu0.b32.cont [9/16] %v302, 128
  %383 = vxpose.xlu0.b32.cont [10/16] %v303, 128
  %384 = vxpose.xlu0.b32.cont [11/16] %v304, 128
  %385 = vxpose.xlu0.b32.cont [12/16] %v305, 128
  %386 = vxpose.xlu0.b32.cont [13/16] %v306, 128
  %387 = vxpose.xlu0.b32.cont [14/16] %v307, 128
  %388 = vxpose.xlu0.b32.cont [15/16] %v308, 128
  %389 = vxpose.xlu0.b32.end [16/16] %v309, 128
  %v390 = vpop.trf.xlu0
  %v391 = vpop.trf.xlu0
  %v392 = vpop.trf.xlu0
  %v393 = vpop.trf.xlu0
  %v394 = vpop.trf.xlu0
  %v395 = vpop.trf.xlu0
  %v396 = vpop.trf.xlu0
  %v397 = vpop.trf.xlu0
  %v398 = vpop.trf.xlu0
  %v399 = vpop.trf.xlu0
  %v400 = vpop.trf.xlu0
  %v401 = vpop.trf.xlu0
  %v402 = vpop.trf.xlu0
  %v403 = vpop.trf.xlu0
  %v404 = vpop.trf.xlu0
  %v405 = vpop.trf.xlu0
  %406 = vxpose.xlu0.b32.start [1/16] %v310, 128
  %407 = vxpose.xlu0.b32.cont [2/16] %v311, 128
  %408 = vxpose.xlu0.b32.cont [3/16] %v312, 128
  %409 = vxpose.xlu0.b32.cont [4/16] %v313, 128
  %410 = vxpose.xlu0.b32.cont [5/16] %v314, 128
  %411 = vxpose.xlu0.b32.cont [6/16] %v315, 128
  %412 = vxpose.xlu0.b32.cont [7/16] %v316, 128
  %413 = vxpose.xlu0.b32.cont [8/16] %v317, 128
  %414 = vxpose.xlu0.b32.cont [9/16] %v318, 128
  %415 = vxpose.xlu0.b32.cont [10/16] %v319, 128
  %416 = vxpose.xlu0.b32.cont [11/16] %v320, 128
  %417 = vxpose.xlu0.b32.cont [12/16] %v321, 128
  %418 = vxpose.xlu0.b32.cont [13/16] %v322, 128
  %419 = vxpose.xlu0.b32.cont [14/16] %v323, 128
  %420 = vxpose.xlu0.b32.cont [15/16] %v324, 128
  %421 = vxpose.xlu0.b32.end [16/16] %v325, 128
  %v422 = vpop.trf.xlu0
  %v423 = vpop.trf.xlu0
  %v424 = vpop.trf.xlu0
  %v425 = vpop.trf.xlu0
  %v426 = vpop.trf.xlu0
  %v427 = vpop.trf.xlu0
  %v428 = vpop.trf.xlu0
  %v429 = vpop.trf.xlu0
  %v430 = vpop.trf.xlu0
  %v431 = vpop.trf.xlu0
  %v432 = vpop.trf.xlu0
  %v433 = vpop.trf.xlu0
  %v434 = vpop.trf.xlu0
  %v435 = vpop.trf.xlu0
  %v436 = vpop.trf.xlu0
  %v437 = vpop.trf.xlu0
  %438 = vxpose.xlu0.b32.start [1/16] %v326, 128
  %439 = vxpose.xlu0.b32.cont [2/16] %v327, 128
  %440 = vxpose.xlu0.b32.cont [3/16] %v328, 128
  %441 = vxpose.xlu0.b32.cont [4/16] %v329, 128
  %442 = vxpose.xlu0.b32.cont [5/16] %v330, 128
  %443 = vxpose.xlu0.b32.cont [6/16] %v331, 128
  %444 = vxpose.xlu0.b32.cont [7/16] %v332, 128
  %445 = vxpose.xlu0.b32.cont [8/16] %v333, 128
  %446 = vxpose.xlu0.b32.cont [9/16] %v334, 128
  %447 = vxpose.xlu0.b32.cont [10/16] %v335, 128
  %448 = vxpose.xlu0.b32.cont [11/16] %v336, 128
  %449 = vxpose.xlu0.b32.cont [12/16] %v337, 128
  %450 = vxpose.xlu0.b32.cont [13/16] %v338, 128
  %451 = vxpose.xlu0.b32.cont [14/16] %v339, 128
  %452 = vxpose.xlu0.b32.cont [15/16] %v340, 128
  %453 = vxpose.xlu0.b32.end [16/16] %v341, 128
  %v454 = vpop.trf.xlu0
  %v455 = vpop.trf.xlu0
  %v456 = vpop.trf.xlu0
  %v457 = vpop.trf.xlu0
  %v458 = vpop.trf.xlu0
  %v459 = vpop.trf.xlu0
  %v460 = vpop.trf.xlu0
  %v461 = vpop.trf.xlu0
  %v462 = vpop.trf.xlu0
  %v463 = vpop.trf.xlu0
  %v464 = vpop.trf.xlu0
  %v465 = vpop.trf.xlu0
  %v466 = vpop.trf.xlu0
  %v467 = vpop.trf.xlu0
  %v468 = vpop.trf.xlu0
  %v469 = vpop.trf.xlu0
  %470 = vst [vmem:[%s3] sm:$0xff] %v358
  %471 = vst [vmem:[%s3 + $0x8] sm:$0xff] %v390
  %472 = vst [vmem:[%s3 + $0x10] sm:$0xff] %v422
  %473 = vst [vmem:[%s3 + $0x18] sm:$0xff] %v454
  %474 = vst [vmem:[%s3 + $0x20] sm:$0xff] %v359
  %475 = vst [vmem:[%s3 + $0x28] sm:$0xff] %v391
  %476 = vst [vmem:[%s3 + $0x30] sm:$0xff] %v423
  %477 = vst [vmem:[%s3 + $0x38] sm:$0xff] %v455
  %478 = vst [vmem:[%s3 + $0x40] sm:$0xff] %v360
  %479 = vst [vmem:[%s3 + $0x48] sm:$0xff] %v392
  %480 = vst [vmem:[%s3 + $0x50] sm:$0xff] %v424
  %481 = vst [vmem:[%s3 + $0x58] sm:$0xff] %v456
  %482 = vst [vmem:[%s3 + $0x60] sm:$0xff] %v361
  %483 = vst [vmem:[%s3 + $0x68] sm:$0xff] %v393
  %484 = vst [vmem:[%s3 + $0x70] sm:$0xff] %v425
  %485 = vst [vmem:[%s3 + $0x78] sm:$0xff] %v457
  %486 = vst [vmem:[%s3 + $0x80] sm:$0xff] %v362
  %487 = vst [vmem:[%s3 + $0x88] sm:$0xff] %v394
  %488 = vst [vmem:[%s3 + $0x90] sm:$0xff] %v426
  %489 = vst [vmem:[%s3 + $0x98] sm:$0xff] %v458
  %490 = vst [vmem:[%s3 + $0xa0] sm:$0xff] %v363
  %491 = vst [vmem:[%s3 + $0xa8] sm:$0xff] %v395
  %492 = vst [vmem:[%s3 + $0xb0] sm:$0xff] %v427
  %493 = vst [vmem:[%s3 + $0xb8] sm:$0xff] %v459
  %494 = vst [vmem:[%s3 + $0xc0] sm:$0xff] %v364
  %495 = vst [vmem:[%s3 + $0xc8] sm:$0xff] %v396
  %496 = vst [vmem:[%s3 + $0xd0] sm:$0xff] %v428
  %497 = vst [vmem:[%s3 + $0xd8] sm:$0xff] %v460
  %498 = vst [vmem:[%s3 + $0xe0] sm:$0xff] %v365
  %499 = vst [vmem:[%s3 + $0xe8] sm:$0xff] %v397
  %500 = vst [vmem:[%s3 + $0xf0] sm:$0xff] %v429
  %501 = vst [vmem:[%s3 + $0xf8] sm:$0xff] %v461
  %502 = vst [vmem:[%s3 + $0x100] sm:$0xff] %v366
  %503 = vst [vmem:[%s3 + $0x108] sm:$0xff] %v398
  %504 = vst [vmem:[%s3 + $0x110] sm:$0xff] %v430
  %505 = vst [vmem:[%s3 + $0x118] sm:$0xff] %v462
  %506 = vst [vmem:[%s3 + $0x120] sm:$0xff] %v367
  %507 = vst [vmem:[%s3 + $0x128] sm:$0xff] %v399
  %508 = vst [vmem:[%s3 + $0x130] sm:$0xff] %v431
  %509 = vst [vmem:[%s3 + $0x138] sm:$0xff] %v463
  %510 = vst [vmem:[%s3 + $0x140] sm:$0xff] %v368
  %511 = vst [vmem:[%s3 + $0x148] sm:$0xff] %v400
  %512 = vst [vmem:[%s3 + $0x150] sm:$0xff] %v432
  %513 = vst [vmem:[%s3 + $0x158] sm:$0xff] %v464
  %514 = vst [vmem:[%s3 + $0x160] sm:$0xff] %v369
  %515 = vst [vmem:[%s3 + $0x168] sm:$0xff] %v401
  %516 = vst [vmem:[%s3 + $0x170] sm:$0xff] %v433
  %517 = vst [vmem:[%s3 + $0x178] sm:$0xff] %v465
  %518 = vst [vmem:[%s3 + $0x180] sm:$0xff] %v370
  %519 = vst [vmem:[%s3 + $0x188] sm:$0xff] %v402
  %520 = vst [vmem:[%s3 + $0x190] sm:$0xff] %v434
  %521 = vst [vmem:[%s3 + $0x198] sm:$0xff] %v466
  %522 = vst [vmem:[%s3 + $0x1a0] sm:$0xff] %v371
  %523 = vst [vmem:[%s3 + $0x1a8] sm:$0xff] %v403
  %524 = vst [vmem:[%s3 + $0x1b0] sm:$0xff] %v435
  %525 = vst [vmem:[%s3 + $0x1b8] sm:$0xff] %v467
  %526 = vst [vmem:[%s3 + $0x1c0] sm:$0xff] %v372
  %527 = vst [vmem:[%s3 + $0x1c8] sm:$0xff] %v404
  %528 = vst [vmem:[%s3 + $0x1d0] sm:$0xff] %v436
  %529 = vst [vmem:[%s3 + $0x1d8] sm:$0xff] %v468
  %530 = vst [vmem:[%s3 + $0x1e0] sm:$0xff] %v373
  %531 = vst [vmem:[%s3 + $0x1e8] sm:$0xff] %v405
  %532 = vst [vmem:[%s3 + $0x1f0] sm:$0xff] %v437
  %533 = vst [vmem:[%s3 + $0x1f8] sm:$0xff] %v469
  // Predicated region
  $region14: #{conv_bn_relu.3} parent=0 // pred_check
    _
  $region15: #{conv_bn_relu.3} parent=0 // pred_check_branch
    %535 = sbr.rel (0) target = $region17
  $region16: #{conv_bn_relu.3} parent=0 // pred_region
    _
  $region17: #{conv_bn_relu.3} parent=0 // pred_fallthru
    _
  // Predicated region
  $region18: #{conv_bn_relu.3} parent=0 // pred_check
    _
  $region19: #{conv_bn_relu.3} parent=0 // pred_check_branch
    %537 = sbr.rel (0) target = $region21
  $region20: #{conv_bn_relu.3} parent=0 // pred_region
    _
  $region21: #{conv_bn_relu.3} parent=0 // pred_fallthru
    _

// kernel: conv_bn_relu.2
$region0: #{conv_bn_relu.2}
  #allocation0 [shape = 'u32[]', space=smem, size = 0x4, offset = 0x4, fixed_abs, tag = 'smem constant byte address 0x4 - core index']
  #allocation1 [shape = 'u32[72,128]{1,0:T(1,128)}', space=vmem, size = 0x9000, scoped, tag = 'internal scratch']
  #allocation2 [shape = 'f32[512,128]{1,0:T(8,128)}', space=vmem, size = 0x40000, scoped, tag = 'scratch operand']
  %s0 = inlined_call_operand.vmem [shape: bf16[512,128], index: 0, kind: input, shape index: {}]
  %s1 = inlined_call_operand.vmem [shape: bf16[128,128], index: 1, kind: input, shape index: {}]
  %s2 = inlined_call_operand.vmem [shape: bf16[512,128], index: 2, kind: output, shape index: {0}]
  %s3 = inlined_call_operand.vmem [shape: f32[8,128], index: 3, kind: output, shape index: {1}]
  %s4 = inlined_call_operand.vmem [shape: f32[8,128], index: 4, kind: output, shape index: {2}]
  %5 = xla_tuple %s2, %s3, %s4
  %s6 = sld [smem:[#allocation0]]
  $region42: #{conv_bn_relu.2} parent=0
    _
  %s8 = ssub.s32 1, %s6
  %s9 = scalar_select 0, %s8, %s6
  // Predicated region
  $region2: #{conv_bn_relu.2} parent=0 // pred_check
    _
  $region3: #{conv_bn_relu.2} parent=0 // pred_check_branch
    %11 = sbr.rel (0) target = $region5
  $region4: #{conv_bn_relu.2} parent=0 // pred_region
    _
  $region5: #{conv_bn_relu.2} parent=0 // pred_fallthru
    _
  // Predicated region
  $region6: #{conv_bn_relu.2} parent=0 // pred_check
    _
  $region7: #{conv_bn_relu.2} parent=0 // pred_check_branch
    %13 = sbr.rel (0) target = $region9
  $region8: #{conv_bn_relu.2} parent=0 // pred_region
    _
  $region9: #{conv_bn_relu.2} parent=0 // pred_fallthru
    _
  %p14 = scmp.eq.s32.totalorder 0, 0
  // Predicated region
  $region10: #{conv_bn_relu.2} parent=0 // pred_check
    %p15 = pneg %p14
  $region11: #{conv_bn_relu.2} parent=0 // pred_check_branch
    %17 = sbr.rel (%p15) target = $region13
  $region12: #{conv_bn_relu.2} parent=0 // pred_region
    %18 = vst [vmem:[#allocation2] sm:$0xff] 0.0
    %19 = vst [vmem:[#allocation2 + $0x8] sm:$0xff] 0.0
    %20 = vst [vmem:[#allocation2 + $0x10] sm:$0xff] 0.0
    %21 = vst [vmem:[#allocation2 + $0x18] sm:$0xff] 0.0
    %22 = vst [vmem:[#allocation2 + $0x20] sm:$0xff] 0.0
    %23 = vst [vmem:[#allocation2 + $0x28] sm:$0xff] 0.0
    %24 = vst [vmem:[#allocation2 + $0x30] sm:$0xff] 0.0
    %25 = vst [vmem:[#allocation2 + $0x38] sm:$0xff] 0.0
    %26 = vst [vmem:[#allocation2 + $0x40] sm:$0xff] 0.0
    %27 = vst [vmem:[#allocation2 + $0x48] sm:$0xff] 0.0
    %28 = vst [vmem:[#allocation2 + $0x50] sm:$0xff] 0.0
    %29 = vst [vmem:[#allocation2 + $0x58] sm:$0xff] 0.0
    %30 = vst [vmem:[#allocation2 + $0x60] sm:$0xff] 0.0
    %31 = vst [vmem:[#allocation2 + $0x68] sm:$0xff] 0.0
    %32 = vst [vmem:[#allocation2 + $0x70] sm:$0xff] 0.0
    %33 = vst [vmem:[#allocation2 + $0x78] sm:$0xff] 0.0
    %34 = vst [vmem:[#allocation2 + $0x80] sm:$0xff] 0.0
    %35 = vst [vmem:[#allocation2 + $0x88] sm:$0xff] 0.0
    %36 = vst [vmem:[#allocation2 + $0x90] sm:$0xff] 0.0
    %37 = vst [vmem:[#allocation2 + $0x98] sm:$0xff] 0.0
    %38 = vst [vmem:[#allocation2 + $0xa0] sm:$0xff] 0.0
    %39 = vst [vmem:[#allocation2 + $0xa8] sm:$0xff] 0.0
    %40 = vst [vmem:[#allocation2 + $0xb0] sm:$0xff] 0.0
    %41 = vst [vmem:[#allocation2 + $0xb8] sm:$0xff] 0.0
    %42 = vst [vmem:[#allocation2 + $0xc0] sm:$0xff] 0.0
    %43 = vst [vmem:[#allocation2 + $0xc8] sm:$0xff] 0.0
    %44 = vst [vmem:[#allocation2 + $0xd0] sm:$0xff] 0.0
    %45 = vst [vmem:[#allocation2 + $0xd8] sm:$0xff] 0.0
    %46 = vst [vmem:[#allocation2 + $0xe0] sm:$0xff] 0.0
    %47 = vst [vmem:[#allocation2 + $0xe8] sm:$0xff] 0.0
    %48 = vst [vmem:[#allocation2 + $0xf0] sm:$0xff] 0.0
    %49 = vst [vmem:[#allocation2 + $0xf8] sm:$0xff] 0.0
    %50 = vst [vmem:[#allocation2 + $0x100] sm:$0xff] 0.0
    %51 = vst [vmem:[#allocation2 + $0x108] sm:$0xff] 0.0
    %52 = vst [vmem:[#allocation2 + $0x110] sm:$0xff] 0.0
    %53 = vst [vmem:[#allocation2 + $0x118] sm:$0xff] 0.0
    %54 = vst [vmem:[#allocation2 + $0x120] sm:$0xff] 0.0
    %55 = vst [vmem:[#allocation2 + $0x128] sm:$0xff] 0.0
    %56 = vst [vmem:[#allocation2 + $0x130] sm:$0xff] 0.0
    %57 = vst [vmem:[#allocation2 + $0x138] sm:$0xff] 0.0
    %58 = vst [vmem:[#allocation2 + $0x140] sm:$0xff] 0.0
    %59 = vst [vmem:[#allocation2 + $0x148] sm:$0xff] 0.0
    %60 = vst [vmem:[#allocation2 + $0x150] sm:$0xff] 0.0
    %61 = vst [vmem:[#allocation2 + $0x158] sm:$0xff] 0.0
    %62 = vst [vmem:[#allocation2 + $0x160] sm:$0xff] 0.0
    %63 = vst [vmem:[#allocation2 + $0x168] sm:$0xff] 0.0
    %64 = vst [vmem:[#allocation2 + $0x170] sm:$0xff] 0.0
    %65 = vst [vmem:[#allocation2 + $0x178] sm:$0xff] 0.0
    %66 = vst [vmem:[#allocation2 + $0x180] sm:$0xff] 0.0
    %67 = vst [vmem:[#allocation2 + $0x188] sm:$0xff] 0.0
    %68 = vst [vmem:[#allocation2 + $0x190] sm:$0xff] 0.0
    %69 = vst [vmem:[#allocation2 + $0x198] sm:$0xff] 0.0
    %70 = vst [vmem:[#allocation2 + $0x1a0] sm:$0xff] 0.0
    %71 = vst [vmem:[#allocation2 + $0x1a8] sm:$0xff] 0.0
    %72 = vst [vmem:[#allocation2 + $0x1b0] sm:$0xff] 0.0
    %73 = vst [vmem:[#allocation2 + $0x1b8] sm:$0xff] 0.0
    %74 = vst [vmem:[#allocation2 + $0x1c0] sm:$0xff] 0.0
    %75 = vst [vmem:[#allocation2 + $0x1c8] sm:$0xff] 0.0
    %76 = vst [vmem:[#allocation2 + $0x1d0] sm:$0xff] 0.0
    %77 = vst [vmem:[#allocation2 + $0x1d8] sm:$0xff] 0.0
    %78 = vst [vmem:[#allocation2 + $0x1e0] sm:$0xff] 0.0
    %79 = vst [vmem:[#allocation2 + $0x1e8] sm:$0xff] 0.0
    %80 = vst [vmem:[#allocation2 + $0x1f0] sm:$0xff] 0.0
    %81 = vst [vmem:[#allocation2 + $0x1f8] sm:$0xff] 0.0
  $region13: #{conv_bn_relu.2} parent=0 // pred_fallthru
    _
  %v82 = vld [vmem:[#allocation2] sm:$0xff]
  %v83 = vld [vmem:[#allocation2 + $0x8] sm:$0xff]
  %v84 = vld [vmem:[#allocation2 + $0x10] sm:$0xff]
  %v85 = vld [vmem:[#allocation2 + $0x18] sm:$0xff]
  %v86 = vld [vmem:[#allocation2 + $0x20] sm:$0xff]
  %v87 = vld [vmem:[#allocation2 + $0x28] sm:$0xff]
  %v88 = vld [vmem:[#allocation2 + $0x30] sm:$0xff]
  %v89 = vld [vmem:[#allocation2 + $0x38] sm:$0xff]
  %v90 = vld [vmem:[#allocation2 + $0x40] sm:$0xff]
  %v91 = vld [vmem:[#allocation2 + $0x48] sm:$0xff]
  %v92 = vld [vmem:[#allocation2 + $0x50] sm:$0xff]
  %v93 = vld [vmem:[#allocation2 + $0x58] sm:$0xff]
  %v94 = vld [vmem:[#allocation2 + $0x60] sm:$0xff]
  %v95 = vld [vmem:[#allocation2 + $0x68] sm:$0xff]
  %v96 = vld [vmem:[#allocation2 + $0x70] sm:$0xff]
  %v97 = vld [vmem:[#allocation2 + $0x78] sm:$0xff]
  %v98 = vld [vmem:[#allocation2 + $0x80] sm:$0xff]
  %v99 = vld [vmem:[#allocation2 + $0x88] sm:$0xff]
  %v100 = vld [vmem:[#allocation2 + $0x90] sm:$0xff]
  %v101 = vld [vmem:[#allocation2 + $0x98] sm:$0xff]
  %v102 = vld [vmem:[#allocation2 + $0xa0] sm:$0xff]
  %v103 = vld [vmem:[#allocation2 + $0xa8] sm:$0xff]
  %v104 = vld [vmem:[#allocation2 + $0xb0] sm:$0xff]
  %v105 = vld [vmem:[#allocation2 + $0xb8] sm:$0xff]
  %v106 = vld [vmem:[#allocation2 + $0xc0] sm:$0xff]
  %v107 = vld [vmem:[#allocation2 + $0xc8] sm:$0xff]
  %v108 = vld [vmem:[#allocation2 + $0xd0] sm:$0xff]
  %v109 = vld [vmem:[#allocation2 + $0xd8] sm:$0xff]
  %v110 = vld [vmem:[#allocation2 + $0xe0] sm:$0xff]
  %v111 = vld [vmem:[#allocation2 + $0xe8] sm:$0xff]
  %v112 = vld [vmem:[#allocation2 + $0xf0] sm:$0xff]
  %v113 = vld [vmem:[#allocation2 + $0xf8] sm:$0xff]
  %v114 = vld [vmem:[#allocation2 + $0x100] sm:$0xff]
  %v115 = vld [vmem:[#allocation2 + $0x108] sm:$0xff]
  %v116 = vld [vmem:[#allocation2 + $0x110] sm:$0xff]
  %v117 = vld [vmem:[#allocation2 + $0x118] sm:$0xff]
  %v118 = vld [vmem:[#allocation2 + $0x120] sm:$0xff]
  %v119 = vld [vmem:[#allocation2 + $0x128] sm:$0xff]
  %v120 = vld [vmem:[#allocation2 + $0x130] sm:$0xff]
  %v121 = vld [vmem:[#allocation2 + $0x138] sm:$0xff]
  %v122 = vld [vmem:[#allocation2 + $0x140] sm:$0xff]
  %v123 = vld [vmem:[#allocation2 + $0x148] sm:$0xff]
  %v124 = vld [vmem:[#allocation2 + $0x150] sm:$0xff]
  %v125 = vld [vmem:[#allocation2 + $0x158] sm:$0xff]
  %v126 = vld [vmem:[#allocation2 + $0x160] sm:$0xff]
  %v127 = vld [vmem:[#allocation2 + $0x168] sm:$0xff]
  %v128 = vld [vmem:[#allocation2 + $0x170] sm:$0xff]
  %v129 = vld [vmem:[#allocation2 + $0x178] sm:$0xff]
  %v130 = vld [vmem:[#allocation2 + $0x180] sm:$0xff]
  %v131 = vld [vmem:[#allocation2 + $0x188] sm:$0xff]
  %v132 = vld [vmem:[#allocation2 + $0x190] sm:$0xff]
  %v133 = vld [vmem:[#allocation2 + $0x198] sm:$0xff]
  %v134 = vld [vmem:[#allocation2 + $0x1a0] sm:$0xff]
  %v135 = vld [vmem:[#allocation2 + $0x1a8] sm:$0xff]
  %v136 = vld [vmem:[#allocation2 + $0x1b0] sm:$0xff]
  %v137 = vld [vmem:[#allocation2 + $0x1b8] sm:$0xff]
  %v138 = vld [vmem:[#allocation2 + $0x1c0] sm:$0xff]
  %v139 = vld [vmem:[#allocation2 + $0x1c8] sm:$0xff]
  %v140 = vld [vmem:[#allocation2 + $0x1d0] sm:$0xff]
  %v141 = vld [vmem:[#allocation2 + $0x1d8] sm:$0xff]
  %v142 = vld [vmem:[#allocation2 + $0x1e0] sm:$0xff]
  %v143 = vld [vmem:[#allocation2 + $0x1e8] sm:$0xff]
  %v144 = vld [vmem:[#allocation2 + $0x1f0] sm:$0xff]
  %v145 = vld [vmem:[#allocation2 + $0x1f8] sm:$0xff]
  %v146 = vld [vmem:[%s0] sm:$0xf]
  %v147 = vld [vmem:[%s0 + $0x4] sm:$0xf]
  %v148 = vld [vmem:[%s0 + $0x8] sm:$0xf]
  %v149 = vld [vmem:[%s0 + $0xc] sm:$0xf]
  %v150 = vld [vmem:[%s0 + $0x10] sm:$0xf]
  %v151 = vld [vmem:[%s0 + $0x14] sm:$0xf]
  %v152 = vld [vmem:[%s0 + $0x18] sm:$0xf]
  %v153 = vld [vmem:[%s0 + $0x1c] sm:$0xf]
  %v154 = vld [vmem:[%s0 + $0x20] sm:$0xf]
  %v155 = vld [vmem:[%s0 + $0x24] sm:$0xf]
  %v156 = vld [vmem:[%s0 + $0x28] sm:$0xf]
  %v157 = vld [vmem:[%s0 + $0x2c] sm:$0xf]
  %v158 = vld [vmem:[%s0 + $0x30] sm:$0xf]
  %v159 = vld [vmem:[%s0 + $0x34] sm:$0xf]
  %v160 = vld [vmem:[%s0 + $0x38] sm:$0xf]
  %v161 = vld [vmem:[%s0 + $0x3c] sm:$0xf]
  %v162 = vld [vmem:[%s0 + $0x40] sm:$0xf]
  %v163 = vld [vmem:[%s0 + $0x44] sm:$0xf]
  %v164 = vld [vmem:[%s0 + $0x48] sm:$0xf]
  %v165 = vld [vmem:[%s0 + $0x4c] sm:$0xf]
  %v166 = vld [vmem:[%s0 + $0x50] sm:$0xf]
  %v167 = vld [vmem:[%s0 + $0x54] sm:$0xf]
  %v168 = vld [vmem:[%s0 + $0x58] sm:$0xf]
  %v169 = vld [vmem:[%s0 + $0x5c] sm:$0xf]
  %v170 = vld [vmem:[%s0 + $0x60] sm:$0xf]
  %v171 = vld [vmem:[%s0 + $0x64] sm:$0xf]
  %v172 = vld [vmem:[%s0 + $0x68] sm:$0xf]
  %v173 = vld [vmem:[%s0 + $0x6c] sm:$0xf]
  %v174 = vld [vmem:[%s0 + $0x70] sm:$0xf]
  %v175 = vld [vmem:[%s0 + $0x74] sm:$0xf]
  %v176 = vld [vmem:[%s0 + $0x78] sm:$0xf]
  %v177 = vld [vmem:[%s0 + $0x7c] sm:$0xf]
  %v178 = vld [vmem:[%s0 + $0x80] sm:$0xf]
  %v179 = vld [vmem:[%s0 + $0x84] sm:$0xf]
  %v180 = vld [vmem:[%s0 + $0x88] sm:$0xf]
  %v181 = vld [vmem:[%s0 + $0x8c] sm:$0xf]
  %v182 = vld [vmem:[%s0 + $0x90] sm:$0xf]
  %v183 = vld [vmem:[%s0 + $0x94] sm:$0xf]
  %v184 = vld [vmem:[%s0 + $0x98] sm:$0xf]
  %v185 = vld [vmem:[%s0 + $0x9c] sm:$0xf]
  %v186 = vld [vmem:[%s0 + $0xa0] sm:$0xf]
  %v187 = vld [vmem:[%s0 + $0xa4] sm:$0xf]
  %v188 = vld [vmem:[%s0 + $0xa8] sm:$0xf]
  %v189 = vld [vmem:[%s0 + $0xac] sm:$0xf]
  %v190 = vld [vmem:[%s0 + $0xb0] sm:$0xf]
  %v191 = vld [vmem:[%s0 + $0xb4] sm:$0xf]
  %v192 = vld [vmem:[%s0 + $0xb8] sm:$0xf]
  %v193 = vld [vmem:[%s0 + $0xbc] sm:$0xf]
  %v194 = vld [vmem:[%s0 + $0xc0] sm:$0xf]
  %v195 = vld [vmem:[%s0 + $0xc4] sm:$0xf]
  %v196 = vld [vmem:[%s0 + $0xc8] sm:$0xf]
  %v197 = vld [vmem:[%s0 + $0xcc] sm:$0xf]
  %v198 = vld [vmem:[%s0 + $0xd0] sm:$0xf]
  %v199 = vld [vmem:[%s0 + $0xd4] sm:$0xf]
  %v200 = vld [vmem:[%s0 + $0xd8] sm:$0xf]
  %v201 = vld [vmem:[%s0 + $0xdc] sm:$0xf]
  %v202 = vld [vmem:[%s0 + $0xe0] sm:$0xf]
  %v203 = vld [vmem:[%s0 + $0xe4] sm:$0xf]
  %v204 = vld [vmem:[%s0 + $0xe8] sm:$0xf]
  %v205 = vld [vmem:[%s0 + $0xec] sm:$0xf]
  %v206 = vld [vmem:[%s0 + $0xf0] sm:$0xf]
  %v207 = vld [vmem:[%s0 + $0xf4] sm:$0xf]
  %v208 = vld [vmem:[%s0 + $0xf8] sm:$0xf]
  %v209 = vld [vmem:[%s0 + $0xfc] sm:$0xf]
  %v210 = vld [vmem:[%s1] sm:$0xf]
  %v211 = vld [vmem:[%s1 + $0x4] sm:$0xf]
  %v212 = vld [vmem:[%s1 + $0x8] sm:$0xf]
  %v213 = vld [vmem:[%s1 + $0xc] sm:$0xf]
  %v214 = vld [vmem:[%s1 + $0x10] sm:$0xf]
  %v215 = vld [vmem:[%s1 + $0x14] sm:$0xf]
  %v216 = vld [vmem:[%s1 + $0x18] sm:$0xf]
  %v217 = vld [vmem:[%s1 + $0x1c] sm:$0xf]
  %v218 = vld [vmem:[%s1 + $0x20] sm:$0xf]
  %v219 = vld [vmem:[%s1 + $0x24] sm:$0xf]
  %v220 = vld [vmem:[%s1 + $0x28] sm:$0xf]
  %v221 = vld [vmem:[%s1 + $0x2c] sm:$0xf]
  %v222 = vld [vmem:[%s1 + $0x30] sm:$0xf]
  %v223 = vld [vmem:[%s1 + $0x34] sm:$0xf]
  %v224 = vld [vmem:[%s1 + $0x38] sm:$0xf]
  %v225 = vld [vmem:[%s1 + $0x3c] sm:$0xf]
  %v290 = vunpack.c.l.b16 %v146
  %v291 = vunpack.c.l.b16 %v147
  %v292 = vunpack.c.l.b16 %v148
  %v293 = vunpack.c.l.b16 %v149
  %v294 = vunpack.c.l.b16 %v150
  %v295 = vunpack.c.l.b16 %v151
  %v296 = vunpack.c.l.b16 %v152
  %v297 = vunpack.c.l.b16 %v153
  %v298 = vunpack.c.l.b16 %v154
  %v299 = vunpack.c.l.b16 %v155
  %v300 = vunpack.c.l.b16 %v156
  %v301 = vunpack.c.l.b16 %v157
  %v302 = vunpack.c.l.b16 %v158
  %v303 = vunpack.c.l.b16 %v159
  %v304 = vunpack.c.l.b16 %v160
  %v305 = vunpack.c.l.b16 %v161
  %v306 = vunpack.c.l.b16 %v162
  %v307 = vunpack.c.l.b16 %v163
  %v308 = vunpack.c.l.b16 %v164
  %v309 = vunpack.c.l.b16 %v165
  %v310 = vunpack.c.l.b16 %v166
  %v311 = vunpack.c.l.b16 %v167
  %v312 = vunpack.c.l.b16 %v168
  %v313 = vunpack.c.l.b16 %v169
  %v314 = vunpack.c.l.b16 %v170
  %v315 = vunpack.c.l.b16 %v171
  %v316 = vunpack.c.l.b16 %v172
  %v317 = vunpack.c.l.b16 %v173
  %v318 = vunpack.c.l.b16 %v174
  %v319 = vunpack.c.l.b16 %v175
  %v320 = vunpack.c.l.b16 %v176
  %v321 = vunpack.c.l.b16 %v177
  %v322 = vunpack.c.l.b16 %v178
  %v323 = vunpack.c.l.b16 %v179
  %v324 = vunpack.c.l.b16 %v180
  %v325 = vunpack.c.l.b16 %v181
  %v326 = vunpack.c.l.b16 %v182
  %v327 = vunpack.c.l.b16 %v183
  %v328 = vunpack.c.l.b16 %v184
  %v329 = vunpack.c.l.b16 %v185
  %v330 = vunpack.c.l.b16 %v186
  %v331 = vunpack.c.l.b16 %v187
  %v332 = vunpack.c.l.b16 %v188
  %v333 = vunpack.c.l.b16 %v189
  %v334 = vunpack.c.l.b16 %v190
  %v335 = vunpack.c.l.b16 %v191
  %v336 = vunpack.c.l.b16 %v192
  %v337 = vunpack.c.l.b16 %v193
  %v338 = vunpack.c.l.b16 %v194
  %v339 = vunpack.c.l.b16 %v195
  %v340 = vunpack.c.l.b16 %v196
  %v341 = vunpack.c.l.b16 %v197
  %v342 = vunpack.c.l.b16 %v198
  %v343 = vunpack.c.l.b16 %v199
  %v344 = vunpack.c.l.b16 %v200
  %v345 = vunpack.c.l.b16 %v201
  %v346 = vunpack.c.l.b16 %v202
  %v347 = vunpack.c.l.b16 %v203
  %v348 = vunpack.c.l.b16 %v204
  %v349 = vunpack.c.l.b16 %v205
  %v350 = vunpack.c.l.b16 %v206
  %v351 = vunpack.c.l.b16 %v207
  %v352 = vunpack.c.l.b16 %v208
  %v353 = vunpack.c.l.b16 %v209
  %v354 = vpack.c.b16 %v291, %v290
  %v355 = vpack.c.b16 %v293, %v292
  %v356 = vpack.c.b16 %v295, %v294
  %v357 = vpack.c.b16 %v297, %v296
  %v358 = vpack.c.b16 %v299, %v298
  %v359 = vpack.c.b16 %v301, %v300
  %v360 = vpack.c.b16 %v303, %v302
  %v361 = vpack.c.b16 %v305, %v304
  %v362 = vpack.c.b16 %v307, %v306
  %v363 = vpack.c.b16 %v309, %v308
  %v364 = vpack.c.b16 %v311, %v310
  %v365 = vpack.c.b16 %v313, %v312
  %v366 = vpack.c.b16 %v315, %v314
  %v367 = vpack.c.b16 %v317, %v316
  %v368 = vpack.c.b16 %v319, %v318
  %v369 = vpack.c.b16 %v321, %v320
  %v370 = vpack.c.b16 %v323, %v322
  %v371 = vpack.c.b16 %v325, %v324
  %v372 = vpack.c.b16 %v327, %v326
  %v373 = vpack.c.b16 %v329, %v328
  %v374 = vpack.c.b16 %v331, %v330
  %v375 = vpack.c.b16 %v333, %v332
  %v376 = vpack.c.b16 %v335, %v334
  %v377 = vpack.c.b16 %v337, %v336
  %v378 = vpack.c.b16 %v339, %v338
  %v379 = vpack.c.b16 %v341, %v340
  %v380 = vpack.c.b16 %v343, %v342
  %v381 = vpack.c.b16 %v345, %v344
  %v382 = vpack.c.b16 %v347, %v346
  %v383 = vpack.c.b16 %v349, %v348
  %v384 = vpack.c.b16 %v351, %v350
  %v385 = vpack.c.b16 %v353, %v352
  %v434 = vunpack.c.l.b16 %v210
  %v435 = vunpack.c.l.b16 %v211
  %v436 = vunpack.c.l.b16 %v212
  %v437 = vunpack.c.l.b16 %v213
  %v438 = vunpack.c.l.b16 %v214
  %v439 = vunpack.c.l.b16 %v215
  %v440 = vunpack.c.l.b16 %v216
  %v441 = vunpack.c.l.b16 %v217
  %v442 = vunpack.c.l.b16 %v218
  %v443 = vunpack.c.l.b16 %v219
  %v444 = vunpack.c.l.b16 %v220
  %v445 = vunpack.c.l.b16 %v221
  %v446 = vunpack.c.l.b16 %v222
  %v447 = vunpack.c.l.b16 %v223
  %v448 = vunpack.c.l.b16 %v224
  %v449 = vunpack.c.l.b16 %v225
  %v450 = vpack.c.b16 %v435, %v434
  %v451 = vpack.c.b16 %v437, %v436
  %v452 = vpack.c.b16 %v439, %v438
  %v453 = vpack.c.b16 %v441, %v440
  %v454 = vpack.c.b16 %v443, %v442
  %v455 = vpack.c.b16 %v445, %v444
  %v456 = vpack.c.b16 %v447, %v446
  %v457 = vpack.c.b16 %v449, %v448
  %466 = vmatpush.bf16.msra.mxu0 %v457
  %467 = vmatpush.bf16.msra.mxu0 %v456
  %468 = vmatpush.bf16.msra.mxu0 %v455
  %469 = vmatpush.bf16.msra.mxu0 %v454
  %470 = vmatpush.bf16.msra.mxu0 %v453
  %471 = vmatpush.bf16.msra.mxu0 %v452
  %472 = vmatpush.bf16.msra.mxu0 %v451
  %473 = vmatpush.bf16.msra.mxu0 %v450
  %474 = vmatmul.bf16.gmra.mxu0 %v354
  %v475 = vpop.f32.mrf.mxu0
  %v476 = vadd.f32 0.0, %v475
  %v477 = vpop.f32.mrf.mxu0
  %v478 = vadd.f32 0.0, %v477
  %479 = vmatmul.bf16.gmra.mxu0 %v355
  %v480 = vpop.f32.mrf.mxu0
  %v481 = vadd.f32 0.0, %v480
  %v482 = vpop.f32.mrf.mxu0
  %v483 = vadd.f32 0.0, %v482
  %484 = vmatmul.bf16.gmra.mxu0 %v356
  %v485 = vpop.f32.mrf.mxu0
  %v486 = vadd.f32 0.0, %v485
  %v487 = vpop.f32.mrf.mxu0
  %v488 = vadd.f32 0.0, %v487
  %489 = vmatmul.bf16.gmra.mxu0 %v357
  %v490 = vpop.f32.mrf.mxu0
  %v491 = vadd.f32 0.0, %v490
  %v492 = vpop.f32.mrf.mxu0
  %v493 = vadd.f32 0.0, %v492
  %494 = vmatmul.bf16.gmra.mxu0 %v358
  %v495 = vpop.f32.mrf.mxu0
  %v496 = vadd.f32 0.0, %v495
  %v497 = vpop.f32.mrf.mxu0
  %v498 = vadd.f32 0.0, %v497
  %499 = vmatmul.bf16.gmra.mxu0 %v359
  %v500 = vpop.f32.mrf.mxu0
  %v501 = vadd.f32 0.0, %v500
  %v502 = vpop.f32.mrf.mxu0
  %v503 = vadd.f32 0.0, %v502
  %504 = vmatmul.bf16.gmra.mxu0 %v360
  %v505 = vpop.f32.mrf.mxu0
  %v506 = vadd.f32 0.0, %v505
  %v507 = vpop.f32.mrf.mxu0
  %v508 = vadd.f32 0.0, %v507
  %509 = vmatmul.bf16.gmra.mxu0 %v361
  %v510 = vpop.f32.mrf.mxu0
  %v511 = vadd.f32 0.0, %v510
  %v512 = vpop.f32.mrf.mxu0
  %v513 = vadd.f32 0.0, %v512
  %514 = vmatmul.bf16.gmra.mxu0 %v362
  %v515 = vpop.f32.mrf.mxu0
  %v516 = vadd.f32 0.0, %v515
  %v517 = vpop.f32.mrf.mxu0
  %v518 = vadd.f32 0.0, %v517
  %519 = vmatmul.bf16.gmra.mxu0 %v363
  %v520 = vpop.f32.mrf.mxu0
  %v521 = vadd.f32 0.0, %v520
  %v522 = vpop.f32.mrf.mxu0
  %v523 = vadd.f32 0.0, %v522
  %524 = vmatmul.bf16.gmra.mxu0 %v364
  %v525 = vpop.f32.mrf.mxu0
  %v526 = vadd.f32 0.0, %v525
  %v527 = vpop.f32.mrf.mxu0
  %v528 = vadd.f32 0.0, %v527
  %529 = vmatmul.bf16.gmra.mxu0 %v365
  %v530 = vpop.f32.mrf.mxu0
  %v531 = vadd.f32 0.0, %v530
  %v532 = vpop.f32.mrf.mxu0
  %v533 = vadd.f32 0.0, %v532
  %534 = vmatmul.bf16.gmra.mxu0 %v366
  %v535 = vpop.f32.mrf.mxu0
  %v536 = vadd.f32 0.0, %v535
  %v537 = vpop.f32.mrf.mxu0
  %v538 = vadd.f32 0.0, %v537
  %539 = vmatmul.bf16.gmra.mxu0 %v367
  %v540 = vpop.f32.mrf.mxu0
  %v541 = vadd.f32 0.0, %v540
  %v542 = vpop.f32.mrf.mxu0
  %v543 = vadd.f32 0.0, %v542
  %544 = vmatmul.bf16.gmra.mxu0 %v368
  %v545 = vpop.f32.mrf.mxu0
  %v546 = vadd.f32 0.0, %v545
  %v547 = vpop.f32.mrf.mxu0
  %v548 = vadd.f32 0.0, %v547
  %549 = vmatmul.bf16.gmra.mxu0 %v369
  %v550 = vpop.f32.mrf.mxu0
  %v551 = vadd.f32 0.0, %v550
  %v552 = vpop.f32.mrf.mxu0
  %v553 = vadd.f32 0.0, %v552
  %554 = vmatmul.bf16.gmra.mxu0 %v370
  %v555 = vpop.f32.mrf.mxu0
  %v556 = vadd.f32 0.0, %v555
  %v557 = vpop.f32.mrf.mxu0
  %v558 = vadd.f32 0.0, %v557
  %559 = vmatmul.bf16.gmra.mxu0 %v371
  %v560 = vpop.f32.mrf.mxu0
  %v561 = vadd.f32 0.0, %v560
  %v562 = vpop.f32.mrf.mxu0
  %v563 = vadd.f32 0.0, %v562
  %564 = vmatmul.bf16.gmra.mxu0 %v372
  %v565 = vpop.f32.mrf.mxu0
  %v566 = vadd.f32 0.0, %v565
  %v567 = vpop.f32.mrf.mxu0
  %v568 = vadd.f32 0.0, %v567
  %569 = vmatmul.bf16.gmra.mxu0 %v373
  %v570 = vpop.f32.mrf.mxu0
  %v571 = vadd.f32 0.0, %v570
  %v572 = vpop.f32.mrf.mxu0
  %v573 = vadd.f32 0.0, %v572
  %574 = vmatmul.bf16.gmra.mxu0 %v374
  %v575 = vpop.f32.mrf.mxu0
  %v576 = vadd.f32 0.0, %v575
  %v577 = vpop.f32.mrf.mxu0
  %v578 = vadd.f32 0.0, %v577
  %579 = vmatmul.bf16.gmra.mxu0 %v375
  %v580 = vpop.f32.mrf.mxu0
  %v581 = vadd.f32 0.0, %v580
  %v582 = vpop.f32.mrf.mxu0
  %v583 = vadd.f32 0.0, %v582
  %584 = vmatmul.bf16.gmra.mxu0 %v376
  %v585 = vpop.f32.mrf.mxu0
  %v586 = vadd.f32 0.0, %v585
  %v587 = vpop.f32.mrf.mxu0
  %v588 = vadd.f32 0.0, %v587
  %589 = vmatmul.bf16.gmra.mxu0 %v377
  %v590 = vpop.f32.mrf.mxu0
  %v591 = vadd.f32 0.0, %v590
  %v592 = vpop.f32.mrf.mxu0
  %v593 = vadd.f32 0.0, %v592
  %594 = vmatmul.bf16.gmra.mxu0 %v378
  %v595 = vpop.f32.mrf.mxu0
  %v596 = vadd.f32 0.0, %v595
  %v597 = vpop.f32.mrf.mxu0
  %v598 = vadd.f32 0.0, %v597
  %599 = vmatmul.bf16.gmra.mxu0 %v379
  %v600 = vpop.f32.mrf.mxu0
  %v601 = vadd.f32 0.0, %v600
  %v602 = vpop.f32.mrf.mxu0
  %v603 = vadd.f32 0.0, %v602
  %604 = vmatmul.bf16.gmra.mxu0 %v380
  %v605 = vpop.f32.mrf.mxu0
  %v606 = vadd.f32 0.0, %v605
  %v607 = vpop.f32.mrf.mxu0
  %v608 = vadd.f32 0.0, %v607
  %609 = vmatmul.bf16.gmra.mxu0 %v381
  %v610 = vpop.f32.mrf.mxu0
  %v611 = vadd.f32 0.0, %v610
  %v612 = vpop.f32.mrf.mxu0
  %v613 = vadd.f32 0.0, %v612
  %614 = vmatmul.bf16.gmra.mxu0 %v382
  %v615 = vpop.f32.mrf.mxu0
  %v616 = vadd.f32 0.0, %v615
  %v617 = vpop.f32.mrf.mxu0
  %v618 = vadd.f32 0.0, %v617
  %619 = vmatmul.bf16.gmra.mxu0 %v383
  %v620 = vpop.f32.mrf.mxu0
  %v621 = vadd.f32 0.0, %v620
  %v622 = vpop.f32.mrf.mxu0
  %v623 = vadd.f32 0.0, %v622
  %624 = vmatmul.bf16.gmra.mxu0 %v384
  %v625 = vpop.f32.mrf.mxu0
  %v626 = vadd.f32 0.0, %v625
  %v627 = vpop.f32.mrf.mxu0
  %v628 = vadd.f32 0.0, %v627
  %629 = vmatmul.bf16.gmra.mxu0 %v385
  %v630 = vpop.f32.mrf.mxu0
  %v631 = vadd.f32 0.0, %v630
  %v632 = vpop.f32.mrf.mxu0
  %v633 = vadd.f32 0.0, %v632
  %634 = vdwg.mxu0
  %v635 = vadd.f32 %v82, %v476
  %v636 = vadd.f32 %v83, %v478
  %v637 = vadd.f32 %v84, %v481
  %v638 = vadd.f32 %v85, %v483
  %v639 = vadd.f32 %v86, %v486
  %v640 = vadd.f32 %v87, %v488
  %v641 = vadd.f32 %v88, %v491
  %v642 = vadd.f32 %v89, %v493
  %v643 = vadd.f32 %v90, %v496
  %v644 = vadd.f32 %v91, %v498
  %v645 = vadd.f32 %v92, %v501
  %v646 = vadd.f32 %v93, %v503
  %v647 = vadd.f32 %v94, %v506
  %v648 = vadd.f32 %v95, %v508
  %v649 = vadd.f32 %v96, %v511
  %v650 = vadd.f32 %v97, %v513
  %v651 = vadd.f32 %v98, %v516
  %v652 = vadd.f32 %v99, %v518
  %v653 = vadd.f32 %v100, %v521
  %v654 = vadd.f32 %v101, %v523
  %v655 = vadd.f32 %v102, %v526
  %v656 = vadd.f32 %v103, %v528
  %v657 = vadd.f32 %v104, %v531
  %v658 = vadd.f32 %v105, %v533
  %v659 = vadd.f32 %v106, %v536
  %v660 = vadd.f32 %v107, %v538
  %v661 = vadd.f32 %v108, %v541
  %v662 = vadd.f32 %v109, %v543
  %v663 = vadd.f32 %v110, %v546
  %v664 = vadd.f32 %v111, %v548
  %v665 = vadd.f32 %v112, %v551
  %v666 = vadd.f32 %v113, %v553
  %v667 = vadd.f32 %v114, %v556
  %v668 = vadd.f32 %v115, %v558
  %v669 = vadd.f32 %v116, %v561
  %v670 = vadd.f32 %v117, %v563
  %v671 = vadd.f32 %v118, %v566
  %v672 = vadd.f32 %v119, %v568
  %v673 = vadd.f32 %v120, %v571
  %v674 = vadd.f32 %v121, %v573
  %v675 = vadd.f32 %v122, %v576
  %v676 = vadd.f32 %v123, %v578
  %v677 = vadd.f32 %v124, %v581
  %v678 = vadd.f32 %v125, %v583
  %v679 = vadd.f32 %v126, %v586
  %v680 = vadd.f32 %v127, %v588
  %v681 = vadd.f32 %v128, %v591
  %v682 = vadd.f32 %v129, %v593
  %v683 = vadd.f32 %v130, %v596
  %v684 = vadd.f32 %v131, %v598
  %v685 = vadd.f32 %v132, %v601
  %v686 = vadd.f32 %v133, %v603
  %v687 = vadd.f32 %v134, %v606
  %v688 = vadd.f32 %v135, %v608
  %v689 = vadd.f32 %v136, %v611
  %v690 = vadd.f32 %v137, %v613
  %v691 = vadd.f32 %v138, %v616
  %v692 = vadd.f32 %v139, %v618
  %v693 = vadd.f32 %v140, %v621
  %v694 = vadd.f32 %v141, %v623
  %v695 = vadd.f32 %v142, %v626
  %v696 = vadd.f32 %v143, %v628
  %v697 = vadd.f32 %v144, %v631
  %v698 = vadd.f32 %v145, %v633
  %699 = vst [vmem:[#allocation2] sm:$0xff] %v635
  %700 = vst [vmem:[#allocation2 + $0x8] sm:$0xff] %v636
  %701 = vst [vmem:[#allocation2 + $0x10] sm:$0xff] %v637
  %702 = vst [vmem:[#allocation2 + $0x18] sm:$0xff] %v638
  %703 = vst [vmem:[#allocation2 + $0x20] sm:$0xff] %v639
  %704 = vst [vmem:[#allocation2 + $0x28] sm:$0xff] %v640
  %705 = vst [vmem:[#allocation2 + $0x30] sm:$0xff] %v641
  %706 = vst [vmem:[#allocation2 + $0x38] sm:$0xff] %v642
  %707 = vst [vmem:[#allocation2 + $0x40] sm:$0xff] %v643
  %708 = vst [vmem:[#allocation2 + $0x48] sm:$0xff] %v644
  %709 = vst [vmem:[#allocation2 + $0x50] sm:$0xff] %v645
  %710 = vst [vmem:[#allocation2 + $0x58] sm:$0xff] %v646
  %711 = vst [vmem:[#allocation2 + $0x60] sm:$0xff] %v647
  %712 = vst [vmem:[#allocation2 + $0x68] sm:$0xff] %v648
  %713 = vst [vmem:[#allocation2 + $0x70] sm:$0xff] %v649
  %714 = vst [vmem:[#allocation2 + $0x78] sm:$0xff] %v650
  %715 = vst [vmem:[#allocation2 + $0x80] sm:$0xff] %v651
  %716 = vst [vmem:[#allocation2 + $0x88] sm:$0xff] %v652
  %717 = vst [vmem:[#allocation2 + $0x90] sm:$0xff] %v653
  %718 = vst [vmem:[#allocation2 + $0x98] sm:$0xff] %v654
  %719 = vst [vmem:[#allocation2 + $0xa0] sm:$0xff] %v655
  %720 = vst [vmem:[#allocation2 + $0xa8] sm:$0xff] %v656
  %721 = vst [vmem:[#allocation2 + $0xb0] sm:$0xff] %v657
  %722 = vst [vmem:[#allocation2 + $0xb8] sm:$0xff] %v658
  %723 = vst [vmem:[#allocation2 + $0xc0] sm:$0xff] %v659
  %724 = vst [vmem:[#allocation2 + $0xc8] sm:$0xff] %v660
  %725 = vst [vmem:[#allocation2 + $0xd0] sm:$0xff] %v661
  %726 = vst [vmem:[#allocation2 + $0xd8] sm:$0xff] %v662
  %727 = vst [vmem:[#allocation2 + $0xe0] sm:$0xff] %v663
  %728 = vst [vmem:[#allocation2 + $0xe8] sm:$0xff] %v664
  %729 = vst [vmem:[#allocation2 + $0xf0] sm:$0xff] %v665
  %730 = vst [vmem:[#allocation2 + $0xf8] sm:$0xff] %v666
  %731 = vst [vmem:[#allocation2 + $0x100] sm:$0xff] %v667
  %732 = vst [vmem:[#allocation2 + $0x108] sm:$0xff] %v668
  %733 = vst [vmem:[#allocation2 + $0x110] sm:$0xff] %v669
  %734 = vst [vmem:[#allocation2 + $0x118] sm:$0xff] %v670
  %735 = vst [vmem:[#allocation2 + $0x120] sm:$0xff] %v671
  %736 = vst [vmem:[#allocation2 + $0x128] sm:$0xff] %v672
  %737 = vst [vmem:[#allocation2 + $0x130] sm:$0xff] %v673
  %738 = vst [vmem:[#allocation2 + $0x138] sm:$0xff] %v674
  %739 = vst [vmem:[#allocation2 + $0x140] sm:$0xff] %v675
  %740 = vst [vmem:[#allocation2 + $0x148] sm:$0xff] %v676
  %741 = vst [vmem:[#allocation2 + $0x150] sm:$0xff] %v677
  %742 = vst [vmem:[#allocation2 + $0x158] sm:$0xff] %v678
  %743 = vst [vmem:[#allocation2 + $0x160] sm:$0xff] %v679
  %744 = vst [vmem:[#allocation2 + $0x168] sm:$0xff] %v680
  %745 = vst [vmem:[#allocation2 + $0x170] sm:$0xff] %v681
  %746 = vst [vmem:[#allocation2 + $0x178] sm:$0xff] %v682
  %747 = vst [vmem:[#allocation2 + $0x180] sm:$0xff] %v683
  %748 = vst [vmem:[#allocation2 + $0x188] sm:$0xff] %v684
  %749 = vst [vmem:[#allocation2 + $0x190] sm:$0xff] %v685
  %750 = vst [vmem:[#allocation2 + $0x198] sm:$0xff] %v686
  %751 = vst [vmem:[#allocation2 + $0x1a0] sm:$0xff] %v687
  %752 = vst [vmem:[#allocation2 + $0x1a8] sm:$0xff] %v688
  %753 = vst [vmem:[#allocation2 + $0x1b0] sm:$0xff] %v689
  %754 = vst [vmem:[#allocation2 + $0x1b8] sm:$0xff] %v690
  %755 = vst [vmem:[#allocation2 + $0x1c0] sm:$0xff] %v691
  %756 = vst [vmem:[#allocation2 + $0x1c8] sm:$0xff] %v692
  %757 = vst [vmem:[#allocation2 + $0x1d0] sm:$0xff] %v693
  %758 = vst [vmem:[#allocation2 + $0x1d8] sm:$0xff] %v694
  %759 = vst [vmem:[#allocation2 + $0x1e0] sm:$0xff] %v695
  %760 = vst [vmem:[#allocation2 + $0x1e8] sm:$0xff] %v696
  %761 = vst [vmem:[#allocation2 + $0x1f0] sm:$0xff] %v697
  %762 = vst [vmem:[#allocation2 + $0x1f8] sm:$0xff] %v698
  // Predicated region
  $region14: #{conv_bn_relu.2} parent=0 // pred_check
    %p763 = pneg %p14
  $region15: #{conv_bn_relu.2} parent=0 // pred_check_branch
    %765 = sbr.rel (%p763) target = $region17
  $region16: #{conv_bn_relu.2} parent=0 // pred_region
    %v766 = vld [vmem:[#allocation2] sm:$0xff]
    %v767 = vld [vmem:[#allocation2 + $0x8] sm:$0xff]
    %v768 = vld [vmem:[#allocation2 + $0x10] sm:$0xff]
    %v769 = vld [vmem:[#allocation2 + $0x18] sm:$0xff]
    %v770 = vld [vmem:[#allocation2 + $0x20] sm:$0xff]
    %v771 = vld [vmem:[#allocation2 + $0x28] sm:$0xff]
    %v772 = vld [vmem:[#allocation2 + $0x30] sm:$0xff]
    %v773 = vld [vmem:[#allocation2 + $0x38] sm:$0xff]
    %v774 = vld [vmem:[#allocation2 + $0x40] sm:$0xff]
    %v775 = vld [vmem:[#allocation2 + $0x48] sm:$0xff]
    %v776 = vld [vmem:[#allocation2 + $0x50] sm:$0xff]
    %v777 = vld [vmem:[#allocation2 + $0x58] sm:$0xff]
    %v778 = vld [vmem:[#allocation2 + $0x60] sm:$0xff]
    %v779 = vld [vmem:[#allocation2 + $0x68] sm:$0xff]
    %v780 = vld [vmem:[#allocation2 + $0x70] sm:$0xff]
    %v781 = vld [vmem:[#allocation2 + $0x78] sm:$0xff]
    %v782 = vld [vmem:[#allocation2 + $0x80] sm:$0xff]
    %v783 = vld [vmem:[#allocation2 + $0x88] sm:$0xff]
    %v784 = vld [vmem:[#allocation2 + $0x90] sm:$0xff]
    %v785 = vld [vmem:[#allocation2 + $0x98] sm:$0xff]
    %v786 = vld [vmem:[#allocation2 + $0xa0] sm:$0xff]
    %v787 = vld [vmem:[#allocation2 + $0xa8] sm:$0xff]
    %v788 = vld [vmem:[#allocation2 + $0xb0] sm:$0xff]
    %v789 = vld [vmem:[#allocation2 + $0xb8] sm:$0xff]
    %v790 = vld [vmem:[#allocation2 + $0xc0] sm:$0xff]
    %v791 = vld [vmem:[#allocation2 + $0xc8] sm:$0xff]
    %v792 = vld [vmem:[#allocation2 + $0xd0] sm:$0xff]
    %v793 = vld [vmem:[#allocation2 + $0xd8] sm:$0xff]
    %v794 = vld [vmem:[#allocation2 + $0xe0] sm:$0xff]
    %v795 = vld [vmem:[#allocation2 + $0xe8] sm:$0xff]
    %v796 = vld [vmem:[#allocation2 + $0xf0] sm:$0xff]
    %v797 = vld [vmem:[#allocation2 + $0xf8] sm:$0xff]
    %v798 = vld [vmem:[#allocation2 + $0x100] sm:$0xff]
    %v799 = vld [vmem:[#allocation2 + $0x108] sm:$0xff]
    %v800 = vld [vmem:[#allocation2 + $0x110] sm:$0xff]
    %v801 = vld [vmem:[#allocation2 + $0x118] sm:$0xff]
    %v802 = vld [vmem:[#allocation2 + $0x120] sm:$0xff]
    %v803 = vld [vmem:[#allocation2 + $0x128] sm:$0xff]
    %v804 = vld [vmem:[#allocation2 + $0x130] sm:$0xff]
    %v805 = vld [vmem:[#allocation2 + $0x138] sm:$0xff]
    %v806 = vld [vmem:[#allocation2 + $0x140] sm:$0xff]
    %v807 = vld [vmem:[#allocation2 + $0x148] sm:$0xff]
    %v808 = vld [vmem:[#allocation2 + $0x150] sm:$0xff]
    %v809 = vld [vmem:[#allocation2 + $0x158] sm:$0xff]
    %v810 = vld [vmem:[#allocation2 + $0x160] sm:$0xff]
    %v811 = vld [vmem:[#allocation2 + $0x168] sm:$0xff]
    %v812 = vld [vmem:[#allocation2 + $0x170] sm:$0xff]
    %v813 = vld [vmem:[#allocation2 + $0x178] sm:$0xff]
    %v814 = vld [vmem:[#allocation2 + $0x180] sm:$0xff]
    %v815 = vld [vmem:[#allocation2 + $0x188] sm:$0xff]
    %v816 = vld [vmem:[#allocation2 + $0x190] sm:$0xff]
    %v817 = vld [vmem:[#allocation2 + $0x198] sm:$0xff]
    %v818 = vld [vmem:[#allocation2 + $0x1a0] sm:$0xff]
    %v819 = vld [vmem:[#allocation2 + $0x1a8] sm:$0xff]
    %v820 = vld [vmem:[#allocation2 + $0x1b0] sm:$0xff]
    %v821 = vld [vmem:[#allocation2 + $0x1b8] sm:$0xff]
    %v822 = vld [vmem:[#allocation2 + $0x1c0] sm:$0xff]
    %v823 = vld [vmem:[#allocation2 + $0x1c8] sm:$0xff]
    %v824 = vld [vmem:[#allocation2 + $0x1d0] sm:$0xff]
    %v825 = vld [vmem:[#allocation2 + $0x1d8] sm:$0xff]
    %v826 = vld [vmem:[#allocation2 + $0x1e0] sm:$0xff]
    %v827 = vld [vmem:[#allocation2 + $0x1e8] sm:$0xff]
    %v828 = vld [vmem:[#allocation2 + $0x1f0] sm:$0xff]
    %v829 = vld [vmem:[#allocation2 + $0x1f8] sm:$0xff]
    %v830 = vpack.c.bf16 %v766, %v766
    %v831 = vpack.c.bf16 %v767, %v767
    %v832 = vpack.c.bf16 %v768, %v768
    %v833 = vpack.c.bf16 %v769, %v769
    %v834 = vpack.c.bf16 %v770, %v770
    %v835 = vpack.c.bf16 %v771, %v771
    %v836 = vpack.c.bf16 %v772, %v772
    %v837 = vpack.c.bf16 %v773, %v773
    %v838 = vpack.c.bf16 %v774, %v774
    %v839 = vpack.c.bf16 %v775, %v775
    %v840 = vpack.c.bf16 %v776, %v776
    %v841 = vpack.c.bf16 %v777, %v777
    %v842 = vpack.c.bf16 %v778, %v778
    %v843 = vpack.c.bf16 %v779, %v779
    %v844 = vpack.c.bf16 %v780, %v780
    %v845 = vpack.c.bf16 %v781, %v781
    %v846 = vpack.c.bf16 %v782, %v782
    %v847 = vpack.c.bf16 %v783, %v783
    %v848 = vpack.c.bf16 %v784, %v784
    %v849 = vpack.c.bf16 %v785, %v785
    %v850 = vpack.c.bf16 %v786, %v786
    %v851 = vpack.c.bf16 %v787, %v787
    %v852 = vpack.c.bf16 %v788, %v788
    %v853 = vpack.c.bf16 %v789, %v789
    %v854 = vpack.c.bf16 %v790, %v790
    %v855 = vpack.c.bf16 %v791, %v791
    %v856 = vpack.c.bf16 %v792, %v792
    %v857 = vpack.c.bf16 %v793, %v793
    %v858 = vpack.c.bf16 %v794, %v794
    %v859 = vpack.c.bf16 %v795, %v795
    %v860 = vpack.c.bf16 %v796, %v796
    %v861 = vpack.c.bf16 %v797, %v797
    %v862 = vpack.c.bf16 %v798, %v798
    %v863 = vpack.c.bf16 %v799, %v799
    %v864 = vpack.c.bf16 %v800, %v800
    %v865 = vpack.c.bf16 %v801, %v801
    %v866 = vpack.c.bf16 %v802, %v802
    %v867 = vpack.c.bf16 %v803, %v803
    %v868 = vpack.c.bf16 %v804, %v804
    %v869 = vpack.c.bf16 %v805, %v805
    %v870 = vpack.c.bf16 %v806, %v806
    %v871 = vpack.c.bf16 %v807, %v807
    %v872 = vpack.c.bf16 %v808, %v808
    %v873 = vpack.c.bf16 %v809, %v809
    %v874 = vpack.c.bf16 %v810, %v810
    %v875 = vpack.c.bf16 %v811, %v811
    %v876 = vpack.c.bf16 %v812, %v812
    %v877 = vpack.c.bf16 %v813, %v813
    %v878 = vpack.c.bf16 %v814, %v814
    %v879 = vpack.c.bf16 %v815, %v815
    %v880 = vpack.c.bf16 %v816, %v816
    %v881 = vpack.c.bf16 %v817, %v817
    %v882 = vpack.c.bf16 %v818, %v818
    %v883 = vpack.c.bf16 %v819, %v819
    %v884 = vpack.c.bf16 %v820, %v820
    %v885 = vpack.c.bf16 %v821, %v821
    %v886 = vpack.c.bf16 %v822, %v822
    %v887 = vpack.c.bf16 %v823, %v823
    %v888 = vpack.c.bf16 %v824, %v824
    %v889 = vpack.c.bf16 %v825, %v825
    %v890 = vpack.c.bf16 %v826, %v826
    %v891 = vpack.c.bf16 %v827, %v827
    %v892 = vpack.c.bf16 %v828, %v828
    %v893 = vpack.c.bf16 %v829, %v829
    %894 = vst [vmem:[%s2] sm:$0xf] %v830
    %895 = vst [vmem:[%s2 + $0x4] sm:$0xf] %v831
    %896 = vst [vmem:[%s2 + $0x8] sm:$0xf] %v832
    %897 = vst [vmem:[%s2 + $0xc] sm:$0xf] %v833
    %898 = vst [vmem:[%s2 + $0x10] sm:$0xf] %v834
    %899 = vst [vmem:[%s2 + $0x14] sm:$0xf] %v835
    %900 = vst [vmem:[%s2 + $0x18] sm:$0xf] %v836
    %901 = vst [vmem:[%s2 + $0x1c] sm:$0xf] %v837
    %902 = vst [vmem:[%s2 + $0x20] sm:$0xf] %v838
    %903 = vst [vmem:[%s2 + $0x24] sm:$0xf] %v839
    %904 = vst [vmem:[%s2 + $0x28] sm:$0xf] %v840
    %905 = vst [vmem:[%s2 + $0x2c] sm:$0xf] %v841
    %906 = vst [vmem:[%s2 + $0x30] sm:$0xf] %v842
    %907 = vst [vmem:[%s2 + $0x34] sm:$0xf] %v843
    %908 = vst [vmem:[%s2 + $0x38] sm:$0xf] %v844
    %909 = vst [vmem:[%s2 + $0x3c] sm:$0xf] %v845
    %910 = vst [vmem:[%s2 + $0x40] sm:$0xf] %v846
    %911 = vst [vmem:[%s2 + $0x44] sm:$0xf] %v847
    %912 = vst [vmem:[%s2 + $0x48] sm:$0xf] %v848
    %913 = vst [vmem:[%s2 + $0x4c] sm:$0xf] %v849
    %914 = vst [vmem:[%s2 + $0x50] sm:$0xf] %v850
    %915 = vst [vmem:[%s2 + $0x54] sm:$0xf] %v851
    %916 = vst [vmem:[%s2 + $0x58] sm:$0xf] %v852
    %917 = vst [vmem:[%s2 + $0x5c] sm:$0xf] %v853
    %918 = vst [vmem:[%s2 + $0x60] sm:$0xf] %v854
    %919 = vst [vmem:[%s2 + $0x64] sm:$0xf] %v855
    %920 = vst [vmem:[%s2 + $0x68] sm:$0xf] %v856
    %921 = vst [vmem:[%s2 + $0x6c] sm:$0xf] %v857
    %922 = vst [vmem:[%s2 + $0x70] sm:$0xf] %v858
    %923 = vst [vmem:[%s2 + $0x74] sm:$0xf] %v859
    %924 = vst [vmem:[%s2 + $0x78] sm:$0xf] %v860
    %925 = vst [vmem:[%s2 + $0x7c] sm:$0xf] %v861
    %926 = vst [vmem:[%s2 + $0x80] sm:$0xf] %v862
    %927 = vst [vmem:[%s2 + $0x84] sm:$0xf] %v863
    %928 = vst [vmem:[%s2 + $0x88] sm:$0xf] %v864
    %929 = vst [vmem:[%s2 + $0x8c] sm:$0xf] %v865
    %930 = vst [vmem:[%s2 + $0x90] sm:$0xf] %v866
    %931 = vst [vmem:[%s2 + $0x94] sm:$0xf] %v867
    %932 = vst [vmem:[%s2 + $0x98] sm:$0xf] %v868
    %933 = vst [vmem:[%s2 + $0x9c] sm:$0xf] %v869
    %934 = vst [vmem:[%s2 + $0xa0] sm:$0xf] %v870
    %935 = vst [vmem:[%s2 + $0xa4] sm:$0xf] %v871
    %936 = vst [vmem:[%s2 + $0xa8] sm:$0xf] %v872
    %937 = vst [vmem:[%s2 + $0xac] sm:$0xf] %v873
    %938 = vst [vmem:[%s2 + $0xb0] sm:$0xf] %v874
    %939 = vst [vmem:[%s2 + $0xb4] sm:$0xf] %v875
    %940 = vst [vmem:[%s2 + $0xb8] sm:$0xf] %v876
    %941 = vst [vmem:[%s2 + $0xbc] sm:$0xf] %v877
    %942 = vst [vmem:[%s2 + $0xc0] sm:$0xf] %v878
    %943 = vst [vmem:[%s2 + $0xc4] sm:$0xf] %v879
    %944 = vst [vmem:[%s2 + $0xc8] sm:$0xf] %v880
    %945 = vst [vmem:[%s2 + $0xcc] sm:$0xf] %v881
    %946 = vst [vmem:[%s2 + $0xd0] sm:$0xf] %v882
    %947 = vst [vmem:[%s2 + $0xd4] sm:$0xf] %v883
    %948 = vst [vmem:[%s2 + $0xd8] sm:$0xf] %v884
    %949 = vst [vmem:[%s2 + $0xdc] sm:$0xf] %v885
    %950 = vst [vmem:[%s2 + $0xe0] sm:$0xf] %v886
    %951 = vst [vmem:[%s2 + $0xe4] sm:$0xf] %v887
    %952 = vst [vmem:[%s2 + $0xe8] sm:$0xf] %v888
    %953 = vst [vmem:[%s2 + $0xec] sm:$0xf] %v889
    %954 = vst [vmem:[%s2 + $0xf0] sm:$0xf] %v890
    %955 = vst [vmem:[%s2 + $0xf4] sm:$0xf] %v891
    %956 = vst [vmem:[%s2 + $0xf8] sm:$0xf] %v892
    %957 = vst [vmem:[%s2 + $0xfc] sm:$0xf] %v893
    %v958 = vadd.f32 %v766, %v767
    %v959 = vadd.f32 %v958, %v768
    %v960 = vadd.f32 %v959, %v769
    %v961 = vadd.f32 %v960, %v770
    %v962 = vadd.f32 %v961, %v771
    %v963 = vadd.f32 %v962, %v772
    %v964 = vadd.f32 %v963, %v773
    %v965 = vadd.f32 %v964, %v774
    %v966 = vadd.f32 %v965, %v775
    %v967 = vadd.f32 %v966, %v776
    %v968 = vadd.f32 %v967, %v777
    %v969 = vadd.f32 %v968, %v778
    %v970 = vadd.f32 %v969, %v779
    %v971 = vadd.f32 %v970, %v780
    %v972 = vadd.f32 %v971, %v781
    %v973 = vadd.f32 %v972, %v782
    %v974 = vadd.f32 %v973, %v783
    %v975 = vadd.f32 %v974, %v784
    %v976 = vadd.f32 %v975, %v785
    %v977 = vadd.f32 %v976, %v786
    %v978 = vadd.f32 %v977, %v787
    %v979 = vadd.f32 %v978, %v788
    %v980 = vadd.f32 %v979, %v789
    %v981 = vadd.f32 %v980, %v790
    %v982 = vadd.f32 %v981, %v791
    %v983 = vadd.f32 %v982, %v792
    %v984 = vadd.f32 %v983, %v793
    %v985 = vadd.f32 %v984, %v794
    %v986 = vadd.f32 %v985, %v795
    %v987 = vadd.f32 %v986, %v796
    %v988 = vadd.f32 %v987, %v797
    %v989 = vadd.f32 %v988, %v798
    %v990 = vadd.f32 %v989, %v799
    %v991 = vadd.f32 %v990, %v800
    %v992 = vadd.f32 %v991, %v801
    %v993 = vadd.f32 %v992, %v802
    %v994 = vadd.f32 %v993, %v803
    %v995 = vadd.f32 %v994, %v804
    %v996 = vadd.f32 %v995, %v805
    %v997 = vadd.f32 %v996, %v806
    %v998 = vadd.f32 %v997, %v807
    %v999 = vadd.f32 %v998, %v808
    %v1000 = vadd.f32 %v999, %v809
    %v1001 = vadd.f32 %v1000, %v810
    %v1002 = vadd.f32 %v1001, %v811
    %v1003 = vadd.f32 %v1002, %v812
    %v1004 = vadd.f32 %v1003, %v813
    %v1005 = vadd.f32 %v1004, %v814
    %v1006 = vadd.f32 %v1005, %v815
    %v1007 = vadd.f32 %v1006, %v816
    %v1008 = vadd.f32 %v1007, %v817
    %v1009 = vadd.f32 %v1008, %v818
    %v1010 = vadd.f32 %v1009, %v819
    %v1011 = vadd.f32 %v1010, %v820
    %v1012 = vadd.f32 %v1011, %v821
    %v1013 = vadd.f32 %v1012, %v822
    %v1014 = vadd.f32 %v1013, %v823
    %v1015 = vadd.f32 %v1014, %v824
    %v1016 = vadd.f32 %v1015, %v825
    %v1017 = vadd.f32 %v1016, %v826
    %v1018 = vadd.f32 %v1017, %v827
    %v1019 = vadd.f32 %v1018, %v828
    %v1020 = vadd.f32 %v1019, %v829
    %v1021 = vrot.slane %v1020, 4
    %v1022 = vadd.f32 %v1020, %v1021
    %v1023 = vrot.slane %v1022, 2
    %v1024 = vadd.f32 %v1022, %v1023
    %v1025 = vrot.slane %v1024, 1
    %v1026 = vadd.f32 %v1024, %v1025
    %v1027 = vmul.f32 %v766, %v766
    %v1028 = vmul.f32 %v767, %v767
    %v1029 = vmul.f32 %v768, %v768
    %v1030 = vmul.f32 %v769, %v769
    %v1031 = vmul.f32 %v770, %v770
    %v1032 = vmul.f32 %v771, %v771
    %v1033 = vmul.f32 %v772, %v772
    %v1034 = vmul.f32 %v773, %v773
    %v1035 = vmul.f32 %v774, %v774
    %v1036 = vmul.f32 %v775, %v775
    %v1037 = vmul.f32 %v776, %v776
    %v1038 = vmul.f32 %v777, %v777
    %v1039 = vmul.f32 %v778, %v778
    %v1040 = vmul.f32 %v779, %v779
    %v1041 = vmul.f32 %v780, %v780
    %v1042 = vmul.f32 %v781, %v781
    %v1043 = vmul.f32 %v782, %v782
    %v1044 = vmul.f32 %v783, %v783
    %v1045 = vmul.f32 %v784, %v784
    %v1046 = vmul.f32 %v785, %v785
    %v1047 = vmul.f32 %v786, %v786
    %v1048 = vmul.f32 %v787, %v787
    %v1049 = vmul.f32 %v788, %v788
    %v1050 = vmul.f32 %v789, %v789
    %v1051 = vmul.f32 %v790, %v790
    %v1052 = vmul.f32 %v791, %v791
    %v1053 = vmul.f32 %v792, %v792
    %v1054 = vmul.f32 %v793, %v793
    %v1055 = vmul.f32 %v794, %v794
    %v1056 = vmul.f32 %v795, %v795
    %v1057 = vmul.f32 %v796, %v796
    %v1058 = vmul.f32 %v797, %v797
    %v1059 = vmul.f32 %v798, %v798
    %v1060 = vmul.f32 %v799, %v799
    %v1061 = vmul.f32 %v800, %v800
    %v1062 = vmul.f32 %v801, %v801
    %v1063 = vmul.f32 %v802, %v802
    %v1064 = vmul.f32 %v803, %v803
    %v1065 = vmul.f32 %v804, %v804
    %v1066 = vmul.f32 %v805, %v805
    %v1067 = vmul.f32 %v806, %v806
    %v1068 = vmul.f32 %v807, %v807
    %v1069 = vmul.f32 %v808, %v808
    %v1070 = vmul.f32 %v809, %v809
    %v1071 = vmul.f32 %v810, %v810
    %v1072 = vmul.f32 %v811, %v811
    %v1073 = vmul.f32 %v812, %v812
    %v1074 = vmul.f32 %v813, %v813
    %v1075 = vmul.f32 %v814, %v814
    %v1076 = vmul.f32 %v815, %v815
    %v1077 = vmul.f32 %v816, %v816
    %v1078 = vmul.f32 %v817, %v817
    %v1079 = vmul.f32 %v818, %v818
    %v1080 = vmul.f32 %v819, %v819
    %v1081 = vmul.f32 %v820, %v820
    %v1082 = vmul.f32 %v821, %v821
    %v1083 = vmul.f32 %v822, %v822
    %v1084 = vmul.f32 %v823, %v823
    %v1085 = vmul.f32 %v824, %v824
    %v1086 = vmul.f32 %v825, %v825
    %v1087 = vmul.f32 %v826, %v826
    %v1088 = vmul.f32 %v827, %v827
    %v1089 = vmul.f32 %v828, %v828
    %v1090 = vmul.f32 %v829, %v829
    %v1091 = vadd.f32 %v1027, %v1028
    %v1092 = vadd.f32 %v1091, %v1029
    %v1093 = vadd.f32 %v1092, %v1030
    %v1094 = vadd.f32 %v1093, %v1031
    %v1095 = vadd.f32 %v1094, %v1032
    %v1096 = vadd.f32 %v1095, %v1033
    %v1097 = vadd.f32 %v1096, %v1034
    %v1098 = vadd.f32 %v1097, %v1035
    %v1099 = vadd.f32 %v1098, %v1036
    %v1100 = vadd.f32 %v1099, %v1037
    %v1101 = vadd.f32 %v1100, %v1038
    %v1102 = vadd.f32 %v1101, %v1039
    %v1103 = vadd.f32 %v1102, %v1040
    %v1104 = vadd.f32 %v1103, %v1041
    %v1105 = vadd.f32 %v1104, %v1042
    %v1106 = vadd.f32 %v1105, %v1043
    %v1107 = vadd.f32 %v1106, %v1044
    %v1108 = vadd.f32 %v1107, %v1045
    %v1109 = vadd.f32 %v1108, %v1046
    %v1110 = vadd.f32 %v1109, %v1047
    %v1111 = vadd.f32 %v1110, %v1048
    %v1112 = vadd.f32 %v1111, %v1049
    %v1113 = vadd.f32 %v1112, %v1050
    %v1114 = vadd.f32 %v1113, %v1051
    %v1115 = vadd.f32 %v1114, %v1052
    %v1116 = vadd.f32 %v1115, %v1053
    %v1117 = vadd.f32 %v1116, %v1054
    %v1118 = vadd.f32 %v1117, %v1055
    %v1119 = vadd.f32 %v1118, %v1056
    %v1120 = vadd.f32 %v1119, %v1057
    %v1121 = vadd.f32 %v1120, %v1058
    %v1122 = vadd.f32 %v1121, %v1059
    %v1123 = vadd.f32 %v1122, %v1060
    %v1124 = vadd.f32 %v1123, %v1061
    %v1125 = vadd.f32 %v1124, %v1062
    %v1126 = vadd.f32 %v1125, %v1063
    %v1127 = vadd.f32 %v1126, %v1064
    %v1128 = vadd.f32 %v1127, %v1065
    %v1129 = vadd.f32 %v1128, %v1066
    %v1130 = vadd.f32 %v1129, %v1067
    %v1131 = vadd.f32 %v1130, %v1068
    %v1132 = vadd.f32 %v1131, %v1069
    %v1133 = vadd.f32 %v1132, %v1070
    %v1134 = vadd.f32 %v1133, %v1071
    %v1135 = vadd.f32 %v1134, %v1072
    %v1136 = vadd.f32 %v1135, %v1073
    %v1137 = vadd.f32 %v1136, %v1074
    %v1138 = vadd.f32 %v1137, %v1075
    %v1139 = vadd.f32 %v1138, %v1076
    %v1140 = vadd.f32 %v1139, %v1077
    %v1141 = vadd.f32 %v1140, %v1078
    %v1142 = vadd.f32 %v1141, %v1079
    %v1143 = vadd.f32 %v1142, %v1080
    %v1144 = vadd.f32 %v1143, %v1081
    %v1145 = vadd.f32 %v1144, %v1082
    %v1146 = vadd.f32 %v1145, %v1083
    %v1147 = vadd.f32 %v1146, %v1084
    %v1148 = vadd.f32 %v1147, %v1085
    %v1149 = vadd.f32 %v1148, %v1086
    %v1150 = vadd.f32 %v1149, %v1087
    %v1151 = vadd.f32 %v1150, %v1088
    %v1152 = vadd.f32 %v1151, %v1089
    %v1153 = vadd.f32 %v1152, %v1090
    %v1154 = vrot.slane %v1153, 4
    %v1155 = vadd.f32 %v1153, %v1154
    %v1156 = vrot.slane %v1155, 2
    %v1157 = vadd.f32 %v1155, %v1156
    %v1158 = vrot.slane %v1157, 1
    %v1159 = vadd.f32 %v1157, %v1158
    %v1160 = vlaneseq
    %v1161 = vshrl.u32 %v1160, 7
    %vm1162 = vcmp.eq.s32.totalorder %v1161, 0
    %v1163 = vsel %vm1162, %v1026, 0.0
    %1164 = vst [vmem:[%s3] sm:$0xff] %v1163
    %v1165 = vsel %vm1162, %v1159, 0.0
    %1166 = vst [vmem:[%s4] sm:$0xff] %v1165
  $region17: #{conv_bn_relu.2} parent=0 // pred_fallthru
    _
  // Predicated region
  $region18: #{conv_bn_relu.2} parent=0 // pred_check
    _
  $region19: #{conv_bn_relu.2} parent=0 // pred_check_branch
    %1168 = sbr.rel (0) target = $region21
  $region20: #{conv_bn_relu.2} parent=0 // pred_region
    _
  $region21: #{conv_bn_relu.2} parent=0 // pred_fallthru
    _
  // Predicated region
  $region22: #{conv_bn_relu.2} parent=0 // pred_check
    _
  $region23: #{conv_bn_relu.2} parent=0 // pred_check_branch
    %1170 = sbr.rel (0) target = $region25
  $region24: #{conv_bn_relu.2} parent=0 // pred_region
    _
  $region25: #{conv_bn_relu.2} parent=0 // pred_fallthru
    _
  // Predicated region
  $region26: #{conv_bn_relu.2} parent=0 // pred_check
    _
  $region27: #{conv_bn_relu.2} parent=0 // pred_check_branch
    %1172 = sbr.rel (0) target = $region29
  $region28: #{conv_bn_relu.2} parent=0 // pred_region
    _
  $region29: #{conv_bn_relu.2} parent=0 // pred_fallthru
    _
  // Predicated region
  $region30: #{conv_bn_relu.2} parent=0 // pred_check
    _
  $region31: #{conv_bn_relu.2} parent=0 // pred_check_branch
    %1174 = sbr.rel (0) target = $region33
  $region32: #{conv_bn_relu.2} parent=0 // pred_region
    _
  $region33: #{conv_bn_relu.2} parent=0 // pred_fallthru
    _
  // Predicated region
  $region34: #{conv_bn_relu.2} parent=0 // pred_check
    _
  $region35: #{conv_bn_relu.2} parent=0 // pred_check_branch
    %1176 = sbr.rel (0) target = $region37
  $region36: #{conv_bn_relu.2} parent=0 // pred_region
    _
  $region37: #{conv_bn_relu.2} parent=0 // pred_fallthru
    _
  // Predicated region
  $region38: #{conv_bn_relu.2} parent=0 // pred_check
    _
  $region39: #{conv_bn_relu.2} parent=0 // pred_check_branch
    %1178 = sbr.rel (0) target = $region41
  $region40: #{conv_bn_relu.2} parent=0 // pred_region
    _
  $region41: #{conv_bn_relu.2} parent=0 // pred_fallthru
    _

</llo_original>
